<compile_context>
chip_gen: v5e
topology: v5e:2x2
jax: 0.10.0
libtpu: 0.0.40
codegen_flags: <defaults>
</compile_context>

<pallas_src>
import functools

import jax
import jax.numpy as jnp
from jax.experimental import pallas as pl
from jax.experimental.pallas import tpu as pltpu


def _encoder_kernel(*refs, num_layers, seq_len, batch, hidden):
    """Fused multi-layer LSTM recurrence.  Single grid step; T and L unrolled.

    refs layout:
      inputs : gx0   (T*B, 4H) f32     -- layer-0 x @ W_ih + b (hoisted, wrapper)
               whh0  (H, 4H)   bf16    -- layer-0 recurrent weight
               [wih_l (H, 4H) bf16, whh_l (H, 4H) bf16, b_l (1, 4H) f32]
                                           for l = 1..L-1
      outputs: out (B, T*H)            -- lane-dense slab, last layer's sequence
    Gate column order is [i, f, o, g] (pre-permuted at param-prep time).
    """
    T, B, H = seq_len, batch, hidden
    n_in = 2 + 3 * (num_layers - 1)
    gx0_ref, whh0_ref = refs[0], refs[1]
    layer_refs = refs[2:n_in]
    out_ref = refs[n_in]

    def gate_math(gates, c):
        # columns: [i, f, o, g] -> one contiguous sigmoid over 3H, one tanh
        sig = jax.nn.sigmoid(gates[:, :3 * H])
        g_g = jnp.tanh(gates[:, 3 * H:])
        i_g = sig[:, 0 * H:1 * H]
        f_g = sig[:, 1 * H:2 * H]
        o_g = sig[:, 2 * H:3 * H]
        c_new = f_g * c + i_g * g_g
        h_new = o_g * jnp.tanh(c_new)
        return h_new, c_new

    def run_layer(gx, whh):
        # gx: (T*B, 4H) f32 (bias already folded in); whh: (H, 4H) bf16.
        # Only h @ W_hh (K = H) remains on the serial critical path.
        h = jnp.zeros((B, H), jnp.float32)
        c = jnp.zeros((B, H), jnp.float32)
        seq = []
        for t in range(T):  # static unroll; h/c are loop-carried values
            gates = gx[t * B:(t + 1) * B, :] + jnp.dot(
                h.astype(whh.dtype), whh, preferred_element_type=jnp.float32)
            h, c = gate_math(gates, c)
            seq.append(h)
        return seq

    # ---- layer 0 (input projection pre-computed in the wrapper) ----
    seq = run_layer(gx0_ref[...], whh0_ref[...])

    # ---- layers 1..L-1: hoisted per-layer input GEMM, then recurrence ----
    for layer in range(1, num_layers):
        wih = layer_refs[3 * (layer - 1) + 0][...]   # (H, 4H) bf16
        whh = layer_refs[3 * (layer - 1) + 1][...]   # (H, 4H) bf16
        bias = layer_refs[3 * (layer - 1) + 2][...]  # (1, 4H) f32
        x_all = jnp.concatenate(seq, axis=0)         # (T*B, H) f32
        gx = jnp.dot(x_all.astype(wih.dtype), wih,
                     preferred_element_type=jnp.float32) + bias
        seq = run_layer(gx, whh)

    # Single lane-dense (B, T*H) slab store for the whole output sequence.
    out_ref[...] = jnp.concatenate(seq, axis=1).astype(out_ref.dtype)


def prepare_encoder_params(params, matmul_dtype=jnp.bfloat16):
    """One-time prep: permute gate columns [i,f,g,o] -> [i,f,o,g] and cast
    the in-kernel matmul weights to bf16 (f32 accumulation in the kernel)."""
    def reorder(w):
        h4 = w.shape[-1]
        h = h4 // 4
        return jnp.concatenate(
            [w[..., :2 * h], w[..., 3 * h:], w[..., 2 * h:3 * h]], axis=-1)

    prepped = []
    for idx, (w_ih, w_hh, b) in enumerate(params):
        w_ih_r = reorder(w_ih)
        w_hh_r = reorder(w_hh).astype(matmul_dtype)
        b_r = reorder(b)
        if idx == 0:
            # layer-0 input GEMM stays in the wrapper in f32 (off critical path)
            prepped.append((w_ih_r, w_hh_r, b_r))
        else:
            prepped.append((w_ih_r.astype(matmul_dtype), w_hh_r, b_r))
    return prepped


def encoder_forward(prepped_params, x):
    """x: (B, T, D) batch_first.  Returns (hidden[-1] (B, H), hidden_outs (B, T, H))."""
    B, T, D = x.shape
    w_ih0, w_hh0, b0 = prepped_params[0]
    H = w_hh0.shape[0]
    L = len(prepped_params)

    # Hoisted layer-0 input projection: one GEMM over all T*B rows (no
    # recurrent dependency -> off the serial critical path).  Bias folded in.
    x_tm = jnp.transpose(x, (1, 0, 2)).reshape(T * B, D)     # time-major rows
    gx0 = (x_tm @ w_ih0 + b0).astype(jnp.float32)            # (T*B, 4H)

    inputs = [gx0, w_hh0]
    in_specs = [
        pl.BlockSpec((T * B, 4 * H), lambda i: (0, 0)),
        pl.BlockSpec((H, 4 * H), lambda i: (0, 0)),
    ]
    for (w_ih, w_hh, b) in prepped_params[1:]:
        inputs += [w_ih, w_hh, b]
        in_specs += [
            pl.BlockSpec((H, 4 * H), lambda i: (0, 0)),
            pl.BlockSpec((H, 4 * H), lambda i: (0, 0)),
            pl.BlockSpec((1, 4 * H), lambda i: (0, 0)),
        ]

    kernel = functools.partial(_encoder_kernel, num_layers=L, seq_len=T,
                               batch=B, hidden=H)

    out = pl.pallas_call(
        kernel,
        out_shape=jax.ShapeDtypeStruct((B, T * H), x.dtype),
        grid_spec=pltpu.PrefetchScalarGridSpec(
            num_scalar_prefetch=0,
            grid=(1,),  # entire recurrence (all layers, all timesteps) fused
            in_specs=in_specs,
            out_specs=pl.BlockSpec((B, T * H), lambda i: (0, 0)),
        ),
        compiler_params=pltpu.CompilerParams(
            dimension_semantics=("arbitrary",),
        ),
    )(*inputs)

    hidden_outs = out.reshape(B, T, H)        # free reshape, already batch-major
    h_last = hidden_outs[:, -1, :]            # == hidden[-1] for zero init state
    return h_last, hidden_outs


def init_encoder_params(key, input_dim, embedding_dim, lstm_layers,
                        dtype=jnp.float32):
    """Deterministic init matching nn.LSTM parameter shapes (PyTorch gate
    order [i, f, g, o]; stored as matmul-friendly transposed forms with the
    summed bias).  Init is U(-1/sqrt(H), 1/sqrt(H)) like PyTorch's default."""
    H = embedding_dim
    bound = 1.0 / jnp.sqrt(jnp.asarray(H, dtype=jnp.float32))
    params = []
    for layer in range(lstm_layers):
        d_in = input_dim if layer == 0 else H
        key, k1, k2, k3, k4 = jax.random.split(key, 5)
        w_ih = jax.random.uniform(k1, (d_in, 4 * H), dtype, -bound, bound)
        w_hh = jax.random.uniform(k2, (H, 4 * H), dtype, -bound, bound)
        b_ih = jax.random.uniform(k3, (4 * H,), dtype, -bound, bound)
        b_hh = jax.random.uniform(k4, (4 * H,), dtype, -bound, bound)
        params.append((w_ih, w_hh, (b_ih + b_hh).reshape(1, 4 * H)))
    return params


# ----------------------- pure-JAX reference (for checking) -----------------------
def _lstm_layer_ref(x_tm, w_ih, w_hh, b):
    T, B, _ = x_tm.shape
    H = w_hh.shape[0]

    def step(carry, x_t):
        h, c = carry
        gates = x_t @ w_ih + h @ w_hh + b
        i_g = jax.nn.sigmoid(gates[:, 0 * H:1 * H])
        f_g = jax.nn.sigmoid(gates[:, 1 * H:2 * H])
        g_g = jnp.tanh(gates[:, 2 * H:3 * H])
        o_g = jax.nn.sigmoid(gates[:, 3 * H:4 * H])
        c_new = f_g * c + i_g * g_g
        h_new = o_g * jnp.tanh(c_new)
        return (h_new, c_new), h_new

    init = (jnp.zeros((B, H), x_tm.dtype), jnp.zeros((B, H), x_tm.dtype))
    (h_last, _), outs = jax.lax.scan(step, init, x_tm)
    return outs, h_last


def encoder_forward_ref(params, x):
    x_tm = jnp.transpose(x, (1, 0, 2))
    h_last = None
    for (w_ih, w_hh, b) in params:
        x_tm, h_last = _lstm_layer_ref(x_tm, w_ih, w_hh, b)
    return h_last, jnp.transpose(x_tm, (1, 0, 2))


if __name__ == "__main__":
    # Small shapes consistent with the module: batch=2, seq=8, input_dim=4,
    # embedding_dim (hidden)=32, lstm_layers=2.
    B, T, D, H, L = 2, 8, 4, 32, 2

    key = jax.random.PRNGKey(0)
    key_p, key_x = jax.random.split(key)
    params = init_encoder_params(key_p, input_dim=D, embedding_dim=H,
                                 lstm_layers=L)
    prepped = prepare_encoder_params(params)        # one-time prep (gate perm + bf16)
    x = jax.random.normal(key_x, (B, T, D), dtype=jnp.float32)

    h_last, hidden_outs = encoder_forward(prepped, x)
    h_last = jax.block_until_ready(h_last)
    hidden_outs = jax.block_until_ready(hidden_outs)

    # sanity-check against pure-JAX f32 reference (bf16 MXU operands ->
    # slightly loosened tolerances)
    h_ref, outs_ref = encoder_forward_ref(params, x)
    assert h_last.shape == (B, H)
    assert hidden_outs.shape == (B, T, H)
    assert jnp.allclose(h_last, h_ref, atol=2e-2, rtol=2e-2)
    assert jnp.allclose(hidden_outs, outs_ref, atol=2e-2, rtol=2e-2)

    print("KERNEL_OK")
</pallas_src>

<mosaic_0001>
module attributes {stable_mosaic.version = 11 : i64} {
  func.func @_encoder_kernel(%arg0: i32, %arg1: memref<16x128xf32, #tpu.memory_space<vmem>>, %arg2: memref<32x128xbf16, #tpu.memory_space<vmem>>, %arg3: memref<32x128xbf16, #tpu.memory_space<vmem>>, %arg4: memref<32x128xbf16, #tpu.memory_space<vmem>>, %arg5: memref<1x128xf32, #tpu.memory_space<vmem>>, %arg6: memref<2x256xf32, #tpu.memory_space<vmem>>) attributes {dimension_semantics = [#tpu.dimension_semantics<arbitrary>], iteration_bounds = array<i64: 1>, scalar_prefetch = 0 : i64, scratch_operands = 0 : i64, tpu.core_type = #tpu.core_type<tc>, window_params = [{pipeline_mode = #tpu.pipeline_mode<synchronous>, transform_indices = @transform_0, window_bounds = array<i64: 16, 128>}, {pipeline_mode = #tpu.pipeline_mode<synchronous>, transform_indices = @transform_1, window_bounds = array<i64: 32, 128>}, {pipeline_mode = #tpu.pipeline_mode<synchronous>, transform_indices = @transform_2, window_bounds = array<i64: 32, 128>}, {pipeline_mode = #tpu.pipeline_mode<synchronous>, transform_indices = @transform_3, window_bounds = array<i64: 32, 128>}, {pipeline_mode = #tpu.pipeline_mode<synchronous>, transform_indices = @transform_4, window_bounds = array<i64: 1, 128>}, {pipeline_mode = #tpu.pipeline_mode<synchronous>, transform_indices = @transform_5, window_bounds = array<i64: 2, 256>}]} {
    %c0 = arith.constant 0 : index
    %c0_0 = arith.constant 0 : index
    %0 = vector.load %arg1[%c0, %c0_0] : memref<16x128xf32, #tpu.memory_space<vmem>>, vector<16x128xf32>
    %c0_1 = arith.constant 0 : index
    %c0_2 = arith.constant 0 : index
    %1 = vector.load %arg2[%c0_1, %c0_2] : memref<32x128xbf16, #tpu.memory_space<vmem>>, vector<32x128xbf16>
    %cst = arith.constant 0.000000e+00 : f32
    %2 = vector.broadcast %cst : f32 to vector<2x32xf32>
    %cst_3 = arith.constant 0.000000e+00 : f32
    %3 = vector.broadcast %cst_3 : f32 to vector<2x32xf32>
    %4 = vector.extract_strided_slice %0 {offsets = [0, 0], sizes = [2, 128], strides = [1, 1]} : vector<16x128xf32> to vector<2x128xf32>
    %5 = arith.truncf %2 : vector<2x32xf32> to vector<2x32xbf16>
    %cst_4 = arith.constant dense<0.000000e+00> : vector<2x128xf32>
    %6 = tpu.matmul %5, %1, %cst_4 {dimension_numbers = #tpu.dot_dimension_numbers<[1], [0], [0], [1], [0, 0, 1, 1], [], []>} : vector<2x32xbf16>, vector<32x128xbf16>, vector<2x128xf32> -> vector<2x128xf32>
    %7 = arith.addf %4, %6 : vector<2x128xf32>
    %8 = vector.extract_strided_slice %7 {offsets = [0, 0], sizes = [2, 96], strides = [1, 1]} : vector<2x128xf32> to vector<2x96xf32>
    %9 = arith.negf %8 : vector<2x96xf32>
    %10 = math.exp %9 : vector<2x96xf32>
    %cst_5 = arith.constant 1.000000e+00 : f32
    %11 = vector.broadcast %cst_5 : f32 to vector<2x96xf32>
    %12 = arith.addf %11, %10 : vector<2x96xf32>
    %13 = arith.divf %11, %12 : vector<2x96xf32>
    %14 = vector.extract_strided_slice %7 {offsets = [0, 96], sizes = [2, 32], strides = [1, 1]} : vector<2x128xf32> to vector<2x32xf32>
    %15 = math.tanh %14 : vector<2x32xf32>
    %16 = vector.extract_strided_slice %13 {offsets = [0, 0], sizes = [2, 32], strides = [1, 1]} : vector<2x96xf32> to vector<2x32xf32>
    %17 = vector.extract_strided_slice %13 {offsets = [0, 32], sizes = [2, 32], strides = [1, 1]} : vector<2x96xf32> to vector<2x32xf32>
    %18 = vector.extract_strided_slice %13 {offsets = [0, 64], sizes = [2, 32], strides = [1, 1]} : vector<2x96xf32> to vector<2x32xf32>
    %19 = arith.mulf %17, %3 : vector<2x32xf32>
    %20 = arith.mulf %16, %15 : vector<2x32xf32>
    %21 = arith.addf %19, %20 : vector<2x32xf32>
    %22 = math.tanh %21 : vector<2x32xf32>
    %23 = arith.mulf %18, %22 : vector<2x32xf32>
    %24 = vector.extract_strided_slice %0 {offsets = [2, 0], sizes = [2, 128], strides = [1, 1]} : vector<16x128xf32> to vector<2x128xf32>
    %25 = arith.truncf %23 : vector<2x32xf32> to vector<2x32xbf16>
    %cst_6 = arith.constant dense<0.000000e+00> : vector<2x128xf32>
    %26 = tpu.matmul %25, %1, %cst_6 {dimension_numbers = #tpu.dot_dimension_numbers<[1], [0], [0], [1], [0, 0, 1, 1], [], []>} : vector<2x32xbf16>, vector<32x128xbf16>, vector<2x128xf32> -> vector<2x128xf32>
    %27 = arith.addf %24, %26 : vector<2x128xf32>
    %28 = vector.extract_strided_slice %27 {offsets = [0, 0], sizes = [2, 96], strides = [1, 1]} : vector<2x128xf32> to vector<2x96xf32>
    %29 = arith.negf %28 : vector<2x96xf32>
    %30 = math.exp %29 : vector<2x96xf32>
    %cst_7 = arith.constant 1.000000e+00 : f32
    %31 = vector.broadcast %cst_7 : f32 to vector<2x96xf32>
    %32 = arith.addf %31, %30 : vector<2x96xf32>
    %33 = arith.divf %31, %32 : vector<2x96xf32>
    %34 = vector.extract_strided_slice %27 {offsets = [0, 96], sizes = [2, 32], strides = [1, 1]} : vector<2x128xf32> to vector<2x32xf32>
    %35 = math.tanh %34 : vector<2x32xf32>
    %36 = vector.extract_strided_slice %33 {offsets = [0, 0], sizes = [2, 32], strides = [1, 1]} : vector<2x96xf32> to vector<2x32xf32>
    %37 = vector.extract_strided_slice %33 {offsets = [0, 32], sizes = [2, 32], strides = [1, 1]} : vector<2x96xf32> to vector<2x32xf32>
    %38 = vector.extract_strided_slice %33 {offsets = [0, 64], sizes = [2, 32], strides = [1, 1]} : vector<2x96xf32> to vector<2x32xf32>
    %39 = arith.mulf %37, %21 : vector<2x32xf32>
    %40 = arith.mulf %36, %35 : vector<2x32xf32>
    %41 = arith.addf %39, %40 : vector<2x32xf32>
    %42 = math.tanh %41 : vector<2x32xf32>
    %43 = arith.mulf %38, %42 : vector<2x32xf32>
    %44 = vector.extract_strided_slice %0 {offsets = [4, 0], sizes = [2, 128], strides = [1, 1]} : vector<16x128xf32> to vector<2x128xf32>
    %45 = arith.truncf %43 : vector<2x32xf32> to vector<2x32xbf16>
    %cst_8 = arith.constant dense<0.000000e+00> : vector<2x128xf32>
    %46 = tpu.matmul %45, %1, %cst_8 {dimension_numbers = #tpu.dot_dimension_numbers<[1], [0], [0], [1], [0, 0, 1, 1], [], []>} : vector<2x32xbf16>, vector<32x128xbf16>, vector<2x128xf32> -> vector<2x128xf32>
    %47 = arith.addf %44, %46 : vector<2x128xf32>
    %48 = vector.extract_strided_slice %47 {offsets = [0, 0], sizes = [2, 96], strides = [1, 1]} : vector<2x128xf32> to vector<2x96xf32>
    %49 = arith.negf %48 : vector<2x96xf32>
    %50 = math.exp %49 : vector<2x96xf32>
    %cst_9 = arith.constant 1.000000e+00 : f32
    %51 = vector.broadcast %cst_9 : f32 to vector<2x96xf32>
    %52 = arith.addf %51, %50 : vector<2x96xf32>
    %53 = arith.divf %51, %52 : vector<2x96xf32>
    %54 = vector.extract_strided_slice %47 {offsets = [0, 96], sizes = [2, 32], strides = [1, 1]} : vector<2x128xf32> to vector<2x32xf32>
    %55 = math.tanh %54 : vector<2x32xf32>
    %56 = vector.extract_strided_slice %53 {offsets = [0, 0], sizes = [2, 32], strides = [1, 1]} : vector<2x96xf32> to vector<2x32xf32>
    %57 = vector.extract_strided_slice %53 {offsets = [0, 32], sizes = [2, 32], strides = [1, 1]} : vector<2x96xf32> to vector<2x32xf32>
    %58 = vector.extract_strided_slice %53 {offsets = [0, 64], sizes = [2, 32], strides = [1, 1]} : vector<2x96xf32> to vector<2x32xf32>
    %59 = arith.mulf %57, %41 : vector<2x32xf32>
    %60 = arith.mulf %56, %55 : vector<2x32xf32>
    %61 = arith.addf %59, %60 : vector<2x32xf32>
    %62 = math.tanh %61 : vector<2x32xf32>
    %63 = arith.mulf %58, %62 : vector<2x32xf32>
    %64 = vector.extract_strided_slice %0 {offsets = [6, 0], sizes = [2, 128], strides = [1, 1]} : vector<16x128xf32> to vector<2x128xf32>
    %65 = arith.truncf %63 : vector<2x32xf32> to vector<2x32xbf16>
    %cst_10 = arith.constant dense<0.000000e+00> : vector<2x128xf32>
    %66 = tpu.matmul %65, %1, %cst_10 {dimension_numbers = #tpu.dot_dimension_numbers<[1], [0], [0], [1], [0, 0, 1, 1], [], []>} : vector<2x32xbf16>, vector<32x128xbf16>, vector<2x128xf32> -> vector<2x128xf32>
    %67 = arith.addf %64, %66 : vector<2x128xf32>
    %68 = vector.extract_strided_slice %67 {offsets = [0, 0], sizes = [2, 96], strides = [1, 1]} : vector<2x128xf32> to vector<2x96xf32>
    %69 = arith.negf %68 : vector<2x96xf32>
    %70 = math.exp %69 : vector<2x96xf32>
    %cst_11 = arith.constant 1.000000e+00 : f32
    %71 = vector.broadcast %cst_11 : f32 to vector<2x96xf32>
    %72 = arith.addf %71, %70 : vector<2x96xf32>
    %73 = arith.divf %71, %72 : vector<2x96xf32>
    %74 = vector.extract_strided_slice %67 {offsets = [0, 96], sizes = [2, 32], strides = [1, 1]} : vector<2x128xf32> to vector<2x32xf32>
    %75 = math.tanh %74 : vector<2x32xf32>
    %76 = vector.extract_strided_slice %73 {offsets = [0, 0], sizes = [2, 32], strides = [1, 1]} : vector<2x96xf32> to vector<2x32xf32>
    %77 = vector.extract_strided_slice %73 {offsets = [0, 32], sizes = [2, 32], strides = [1, 1]} : vector<2x96xf32> to vector<2x32xf32>
    %78 = vector.extract_strided_slice %73 {offsets = [0, 64], sizes = [2, 32], strides = [1, 1]} : vector<2x96xf32> to vector<2x32xf32>
    %79 = arith.mulf %77, %61 : vector<2x32xf32>
    %80 = arith.mulf %76, %75 : vector<2x32xf32>
    %81 = arith.addf %79, %80 : vector<2x32xf32>
    %82 = math.tanh %81 : vector<2x32xf32>
    %83 = arith.mulf %78, %82 : vector<2x32xf32>
    %84 = vector.extract_strided_slice %0 {offsets = [8, 0], sizes = [2, 128], strides = [1, 1]} : vector<16x128xf32> to vector<2x128xf32>
    %85 = arith.truncf %83 : vector<2x32xf32> to vector<2x32xbf16>
    %cst_12 = arith.constant dense<0.000000e+00> : vector<2x128xf32>
    %86 = tpu.matmul %85, %1, %cst_12 {dimension_numbers = #tpu.dot_dimension_numbers<[1], [0], [0], [1], [0, 0, 1, 1], [], []>} : vector<2x32xbf16>, vector<32x128xbf16>, vector<2x128xf32> -> vector<2x128xf32>
    %87 = arith.addf %84, %86 : vector<2x128xf32>
    %88 = vector.extract_strided_slice %87 {offsets = [0, 0], sizes = [2, 96], strides = [1, 1]} : vector<2x128xf32> to vector<2x96xf32>
    %89 = arith.negf %88 : vector<2x96xf32>
    %90 = math.exp %89 : vector<2x96xf32>
    %cst_13 = arith.constant 1.000000e+00 : f32
    %91 = vector.broadcast %cst_13 : f32 to vector<2x96xf32>
    %92 = arith.addf %91, %90 : vector<2x96xf32>
    %93 = arith.divf %91, %92 : vector<2x96xf32>
    %94 = vector.extract_strided_slice %87 {offsets = [0, 96], sizes = [2, 32], strides = [1, 1]} : vector<2x128xf32> to vector<2x32xf32>
    %95 = math.tanh %94 : vector<2x32xf32>
    %96 = vector.extract_strided_slice %93 {offsets = [0, 0], sizes = [2, 32], strides = [1, 1]} : vector<2x96xf32> to vector<2x32xf32>
    %97 = vector.extract_strided_slice %93 {offsets = [0, 32], sizes = [2, 32], strides = [1, 1]} : vector<2x96xf32> to vector<2x32xf32>
    %98 = vector.extract_strided_slice %93 {offsets = [0, 64], sizes = [2, 32], strides = [1, 1]} : vector<2x96xf32> to vector<2x32xf32>
    %99 = arith.mulf %97, %81 : vector<2x32xf32>
    %100 = arith.mulf %96, %95 : vector<2x32xf32>
    %101 = arith.addf %99, %100 : vector<2x32xf32>
    %102 = math.tanh %101 : vector<2x32xf32>
    %103 = arith.mulf %98, %102 : vector<2x32xf32>
    %104 = vector.extract_strided_slice %0 {offsets = [10, 0], sizes = [2, 128], strides = [1, 1]} : vector<16x128xf32> to vector<2x128xf32>
    %105 = arith.truncf %103 : vector<2x32xf32> to vector<2x32xbf16>
    %cst_14 = arith.constant dense<0.000000e+00> : vector<2x128xf32>
    %106 = tpu.matmul %105, %1, %cst_14 {dimension_numbers = #tpu.dot_dimension_numbers<[1], [0], [0], [1], [0, 0, 1, 1], [], []>} : vector<2x32xbf16>, vector<32x128xbf16>, vector<2x128xf32> -> vector<2x128xf32>
    %107 = arith.addf %104, %106 : vector<2x128xf32>
    %108 = vector.extract_strided_slice %107 {offsets = [0, 0], sizes = [2, 96], strides = [1, 1]} : vector<2x128xf32> to vector<2x96xf32>
    %109 = arith.negf %108 : vector<2x96xf32>
    %110 = math.exp %109 : vector<2x96xf32>
    %cst_15 = arith.constant 1.000000e+00 : f32
    %111 = vector.broadcast %cst_15 : f32 to vector<2x96xf32>
    %112 = arith.addf %111, %110 : vector<2x96xf32>
    %113 = arith.divf %111, %112 : vector<2x96xf32>
    %114 = vector.extract_strided_slice %107 {offsets = [0, 96], sizes = [2, 32], strides = [1, 1]} : vector<2x128xf32> to vector<2x32xf32>
    %115 = math.tanh %114 : vector<2x32xf32>
    %116 = vector.extract_strided_slice %113 {offsets = [0, 0], sizes = [2, 32], strides = [1, 1]} : vector<2x96xf32> to vector<2x32xf32>
    %117 = vector.extract_strided_slice %113 {offsets = [0, 32], sizes = [2, 32], strides = [1, 1]} : vector<2x96xf32> to vector<2x32xf32>
    %118 = vector.extract_strided_slice %113 {offsets = [0, 64], sizes = [2, 32], strides = [1, 1]} : vector<2x96xf32> to vector<2x32xf32>
    %119 = arith.mulf %117, %101 : vector<2x32xf32>
    %120 = arith.mulf %116, %115 : vector<2x32xf32>
    %121 = arith.addf %119, %120 : vector<2x32xf32>
    %122 = math.tanh %121 : vector<2x32xf32>
    %123 = arith.mulf %118, %122 : vector<2x32xf32>
    %124 = vector.extract_strided_slice %0 {offsets = [12, 0], sizes = [2, 128], strides = [1, 1]} : vector<16x128xf32> to vector<2x128xf32>
    %125 = arith.truncf %123 : vector<2x32xf32> to vector<2x32xbf16>
    %cst_16 = arith.constant dense<0.000000e+00> : vector<2x128xf32>
    %126 = tpu.matmul %125, %1, %cst_16 {dimension_numbers = #tpu.dot_dimension_numbers<[1], [0], [0], [1], [0, 0, 1, 1], [], []>} : vector<2x32xbf16>, vector<32x128xbf16>, vector<2x128xf32> -> vector<2x128xf32>
    %127 = arith.addf %124, %126 : vector<2x128xf32>
    %128 = vector.extract_strided_slice %127 {offsets = [0, 0], sizes = [2, 96], strides = [1, 1]} : vector<2x128xf32> to vector<2x96xf32>
    %129 = arith.negf %128 : vector<2x96xf32>
    %130 = math.exp %129 : vector<2x96xf32>
    %cst_17 = arith.constant 1.000000e+00 : f32
    %131 = vector.broadcast %cst_17 : f32 to vector<2x96xf32>
    %132 = arith.addf %131, %130 : vector<2x96xf32>
    %133 = arith.divf %131, %132 : vector<2x96xf32>
    %134 = vector.extract_strided_slice %127 {offsets = [0, 96], sizes = [2, 32], strides = [1, 1]} : vector<2x128xf32> to vector<2x32xf32>
    %135 = math.tanh %134 : vector<2x32xf32>
    %136 = vector.extract_strided_slice %133 {offsets = [0, 0], sizes = [2, 32], strides = [1, 1]} : vector<2x96xf32> to vector<2x32xf32>
    %137 = vector.extract_strided_slice %133 {offsets = [0, 32], sizes = [2, 32], strides = [1, 1]} : vector<2x96xf32> to vector<2x32xf32>
    %138 = vector.extract_strided_slice %133 {offsets = [0, 64], sizes = [2, 32], strides = [1, 1]} : vector<2x96xf32> to vector<2x32xf32>
    %139 = arith.mulf %137, %121 : vector<2x32xf32>
    %140 = arith.mulf %136, %135 : vector<2x32xf32>
    %141 = arith.addf %139, %140 : vector<2x32xf32>
    %142 = math.tanh %141 : vector<2x32xf32>
    %143 = arith.mulf %138, %142 : vector<2x32xf32>
    %144 = vector.extract_strided_slice %0 {offsets = [14, 0], sizes = [2, 128], strides = [1, 1]} : vector<16x128xf32> to vector<2x128xf32>
    %145 = arith.truncf %143 : vector<2x32xf32> to vector<2x32xbf16>
    %cst_18 = arith.constant dense<0.000000e+00> : vector<2x128xf32>
    %146 = tpu.matmul %145, %1, %cst_18 {dimension_numbers = #tpu.dot_dimension_numbers<[1], [0], [0], [1], [0, 0, 1, 1], [], []>} : vector<2x32xbf16>, vector<32x128xbf16>, vector<2x128xf32> -> vector<2x128xf32>
    %147 = arith.addf %144, %146 : vector<2x128xf32>
    %148 = vector.extract_strided_slice %147 {offsets = [0, 0], sizes = [2, 96], strides = [1, 1]} : vector<2x128xf32> to vector<2x96xf32>
    %149 = arith.negf %148 : vector<2x96xf32>
    %150 = math.exp %149 : vector<2x96xf32>
    %cst_19 = arith.constant 1.000000e+00 : f32
    %151 = vector.broadcast %cst_19 : f32 to vector<2x96xf32>
    %152 = arith.addf %151, %150 : vector<2x96xf32>
    %153 = arith.divf %151, %152 : vector<2x96xf32>
    %154 = vector.extract_strided_slice %147 {offsets = [0, 96], sizes = [2, 32], strides = [1, 1]} : vector<2x128xf32> to vector<2x32xf32>
    %155 = math.tanh %154 : vector<2x32xf32>
    %156 = vector.extract_strided_slice %153 {offsets = [0, 0], sizes = [2, 32], strides = [1, 1]} : vector<2x96xf32> to vector<2x32xf32>
    %157 = vector.extract_strided_slice %153 {offsets = [0, 32], sizes = [2, 32], strides = [1, 1]} : vector<2x96xf32> to vector<2x32xf32>
    %158 = vector.extract_strided_slice %153 {offsets = [0, 64], sizes = [2, 32], strides = [1, 1]} : vector<2x96xf32> to vector<2x32xf32>
    %159 = arith.mulf %157, %141 : vector<2x32xf32>
    %160 = arith.mulf %156, %155 : vector<2x32xf32>
    %161 = arith.addf %159, %160 : vector<2x32xf32>
    %162 = math.tanh %161 : vector<2x32xf32>
    %163 = arith.mulf %158, %162 : vector<2x32xf32>
    %c0_20 = arith.constant 0 : index
    %c0_21 = arith.constant 0 : index
    %164 = vector.load %arg3[%c0_20, %c0_21] : memref<32x128xbf16, #tpu.memory_space<vmem>>, vector<32x128xbf16>
    %c0_22 = arith.constant 0 : index
    %c0_23 = arith.constant 0 : index
    %165 = vector.load %arg4[%c0_22, %c0_23] : memref<32x128xbf16, #tpu.memory_space<vmem>>, vector<32x128xbf16>
    %c0_24 = arith.constant 0 : index
    %c0_25 = arith.constant 0 : index
    %166 = vector.load %arg5[%c0_24, %c0_25] : memref<1x128xf32, #tpu.memory_space<vmem>>, vector<1x128xf32>
    %167 = tpu.concatenate %23, %43, %63, %83, %103, %123, %143, %163 in 0 : vector<2x32xf32>, vector<2x32xf32>, vector<2x32xf32>, vector<2x32xf32>, vector<2x32xf32>, vector<2x32xf32>, vector<2x32xf32>, vector<2x32xf32> -> vector<16x32xf32>
    %168 = arith.truncf %167 : vector<16x32xf32> to vector<16x32xbf16>
    %cst_26 = arith.constant dense<0.000000e+00> : vector<16x128xf32>
    %169 = tpu.matmul %168, %164, %cst_26 {dimension_numbers = #tpu.dot_dimension_numbers<[1], [0], [0], [1], [0, 0, 1, 1], [], []>} : vector<16x32xbf16>, vector<32x128xbf16>, vector<16x128xf32> -> vector<16x128xf32>
    %170 = vector.broadcast %166 : vector<1x128xf32> to vector<16x128xf32>
    %171 = arith.addf %169, %170 : vector<16x128xf32>
    %cst_27 = arith.constant 0.000000e+00 : f32
    %172 = vector.broadcast %cst_27 : f32 to vector<2x32xf32>
    %cst_28 = arith.constant 0.000000e+00 : f32
    %173 = vector.broadcast %cst_28 : f32 to vector<2x32xf32>
    %174 = vector.extract_strided_slice %171 {offsets = [0, 0], sizes = [2, 128], strides = [1, 1]} : vector<16x128xf32> to vector<2x128xf32>
    %175 = arith.truncf %172 : vector<2x32xf32> to vector<2x32xbf16>
    %cst_29 = arith.constant dense<0.000000e+00> : vector<2x128xf32>
    %176 = tpu.matmul %175, %165, %cst_29 {dimension_numbers = #tpu.dot_dimension_numbers<[1], [0], [0], [1], [0, 0, 1, 1], [], []>} : vector<2x32xbf16>, vector<32x128xbf16>, vector<2x128xf32> -> vector<2x128xf32>
    %177 = arith.addf %174, %176 : vector<2x128xf32>
    %178 = vector.extract_strided_slice %177 {offsets = [0, 0], sizes = [2, 96], strides = [1, 1]} : vector<2x128xf32> to vector<2x96xf32>
    %179 = arith.negf %178 : vector<2x96xf32>
    %180 = math.exp %179 : vector<2x96xf32>
    %cst_30 = arith.constant 1.000000e+00 : f32
    %181 = vector.broadcast %cst_30 : f32 to vector<2x96xf32>
    %182 = arith.addf %181, %180 : vector<2x96xf32>
    %183 = arith.divf %181, %182 : vector<2x96xf32>
    %184 = vector.extract_strided_slice %177 {offsets = [0, 96], sizes = [2, 32], strides = [1, 1]} : vector<2x128xf32> to vector<2x32xf32>
    %185 = math.tanh %184 : vector<2x32xf32>
    %186 = vector.extract_strided_slice %183 {offsets = [0, 0], sizes = [2, 32], strides = [1, 1]} : vector<2x96xf32> to vector<2x32xf32>
    %187 = vector.extract_strided_slice %183 {offsets = [0, 32], sizes = [2, 32], strides = [1, 1]} : vector<2x96xf32> to vector<2x32xf32>
    %188 = vector.extract_strided_slice %183 {offsets = [0, 64], sizes = [2, 32], strides = [1, 1]} : vector<2x96xf32> to vector<2x32xf32>
    %189 = arith.mulf %187, %173 : vector<2x32xf32>
    %190 = arith.mulf %186, %185 : vector<2x32xf32>
    %191 = arith.addf %189, %190 : vector<2x32xf32>
    %192 = math.tanh %191 : vector<2x32xf32>
    %193 = arith.mulf %188, %192 : vector<2x32xf32>
    %194 = vector.extract_strided_slice %171 {offsets = [2, 0], sizes = [2, 128], strides = [1, 1]} : vector<16x128xf32> to vector<2x128xf32>
    %195 = arith.truncf %193 : vector<2x32xf32> to vector<2x32xbf16>
    %cst_31 = arith.constant dense<0.000000e+00> : vector<2x128xf32>
    %196 = tpu.matmul %195, %165, %cst_31 {dimension_numbers = #tpu.dot_dimension_numbers<[1], [0], [0], [1], [0, 0, 1, 1], [], []>} : vector<2x32xbf16>, vector<32x128xbf16>, vector<2x128xf32> -> vector<2x128xf32>
    %197 = arith.addf %194, %196 : vector<2x128xf32>
    %198 = vector.extract_strided_slice %197 {offsets = [0, 0], sizes = [2, 96], strides = [1, 1]} : vector<2x128xf32> to vector<2x96xf32>
    %199 = arith.negf %198 : vector<2x96xf32>
    %200 = math.exp %199 : vector<2x96xf32>
    %cst_32 = arith.constant 1.000000e+00 : f32
    %201 = vector.broadcast %cst_32 : f32 to vector<2x96xf32>
    %202 = arith.addf %201, %200 : vector<2x96xf32>
    %203 = arith.divf %201, %202 : vector<2x96xf32>
    %204 = vector.extract_strided_slice %197 {offsets = [0, 96], sizes = [2, 32], strides = [1, 1]} : vector<2x128xf32> to vector<2x32xf32>
    %205 = math.tanh %204 : vector<2x32xf32>
    %206 = vector.extract_strided_slice %203 {offsets = [0, 0], sizes = [2, 32], strides = [1, 1]} : vector<2x96xf32> to vector<2x32xf32>
    %207 = vector.extract_strided_slice %203 {offsets = [0, 32], sizes = [2, 32], strides = [1, 1]} : vector<2x96xf32> to vector<2x32xf32>
    %208 = vector.extract_strided_slice %203 {offsets = [0, 64], sizes = [2, 32], strides = [1, 1]} : vector<2x96xf32> to vector<2x32xf32>
    %209 = arith.mulf %207, %191 : vector<2x32xf32>
    %210 = arith.mulf %206, %205 : vector<2x32xf32>
    %211 = arith.addf %209, %210 : vector<2x32xf32>
    %212 = math.tanh %211 : vector<2x32xf32>
    %213 = arith.mulf %208, %212 : vector<2x32xf32>
    %214 = vector.extract_strided_slice %171 {offsets = [4, 0], sizes = [2, 128], strides = [1, 1]} : vector<16x128xf32> to vector<2x128xf32>
    %215 = arith.truncf %213 : vector<2x32xf32> to vector<2x32xbf16>
    %cst_33 = arith.constant dense<0.000000e+00> : vector<2x128xf32>
    %216 = tpu.matmul %215, %165, %cst_33 {dimension_numbers = #tpu.dot_dimension_numbers<[1], [0], [0], [1], [0, 0, 1, 1], [], []>} : vector<2x32xbf16>, vector<32x128xbf16>, vector<2x128xf32> -> vector<2x128xf32>
    %217 = arith.addf %214, %216 : vector<2x128xf32>
    %218 = vector.extract_strided_slice %217 {offsets = [0, 0], sizes = [2, 96], strides = [1, 1]} : vector<2x128xf32> to vector<2x96xf32>
    %219 = arith.negf %218 : vector<2x96xf32>
    %220 = math.exp %219 : vector<2x96xf32>
    %cst_34 = arith.constant 1.000000e+00 : f32
    %221 = vector.broadcast %cst_34 : f32 to vector<2x96xf32>
    %222 = arith.addf %221, %220 : vector<2x96xf32>
    %223 = arith.divf %221, %222 : vector<2x96xf32>
    %224 = vector.extract_strided_slice %217 {offsets = [0, 96], sizes = [2, 32], strides = [1, 1]} : vector<2x128xf32> to vector<2x32xf32>
    %225 = math.tanh %224 : vector<2x32xf32>
    %226 = vector.extract_strided_slice %223 {offsets = [0, 0], sizes = [2, 32], strides = [1, 1]} : vector<2x96xf32> to vector<2x32xf32>
    %227 = vector.extract_strided_slice %223 {offsets = [0, 32], sizes = [2, 32], strides = [1, 1]} : vector<2x96xf32> to vector<2x32xf32>
    %228 = vector.extract_strided_slice %223 {offsets = [0, 64], sizes = [2, 32], strides = [1, 1]} : vector<2x96xf32> to vector<2x32xf32>
    %229 = arith.mulf %227, %211 : vector<2x32xf32>
    %230 = arith.mulf %226, %225 : vector<2x32xf32>
    %231 = arith.addf %229, %230 : vector<2x32xf32>
    %232 = math.tanh %231 : vector<2x32xf32>
    %233 = arith.mulf %228, %232 : vector<2x32xf32>
    %234 = vector.extract_strided_slice %171 {offsets = [6, 0], sizes = [2, 128], strides = [1, 1]} : vector<16x128xf32> to vector<2x128xf32>
    %235 = arith.truncf %233 : vector<2x32xf32> to vector<2x32xbf16>
    %cst_35 = arith.constant dense<0.000000e+00> : vector<2x128xf32>
    %236 = tpu.matmul %235, %165, %cst_35 {dimension_numbers = #tpu.dot_dimension_numbers<[1], [0], [0], [1], [0, 0, 1, 1], [], []>} : vector<2x32xbf16>, vector<32x128xbf16>, vector<2x128xf32> -> vector<2x128xf32>
    %237 = arith.addf %234, %236 : vector<2x128xf32>
    %238 = vector.extract_strided_slice %237 {offsets = [0, 0], sizes = [2, 96], strides = [1, 1]} : vector<2x128xf32> to vector<2x96xf32>
    %239 = arith.negf %238 : vector<2x96xf32>
    %240 = math.exp %239 : vector<2x96xf32>
    %cst_36 = arith.constant 1.000000e+00 : f32
    %241 = vector.broadcast %cst_36 : f32 to vector<2x96xf32>
    %242 = arith.addf %241, %240 : vector<2x96xf32>
    %243 = arith.divf %241, %242 : vector<2x96xf32>
    %244 = vector.extract_strided_slice %237 {offsets = [0, 96], sizes = [2, 32], strides = [1, 1]} : vector<2x128xf32> to vector<2x32xf32>
    %245 = math.tanh %244 : vector<2x32xf32>
    %246 = vector.extract_strided_slice %243 {offsets = [0, 0], sizes = [2, 32], strides = [1, 1]} : vector<2x96xf32> to vector<2x32xf32>
    %247 = vector.extract_strided_slice %243 {offsets = [0, 32], sizes = [2, 32], strides = [1, 1]} : vector<2x96xf32> to vector<2x32xf32>
    %248 = vector.extract_strided_slice %243 {offsets = [0, 64], sizes = [2, 32], strides = [1, 1]} : vector<2x96xf32> to vector<2x32xf32>
    %249 = arith.mulf %247, %231 : vector<2x32xf32>
    %250 = arith.mulf %246, %245 : vector<2x32xf32>
    %251 = arith.addf %249, %250 : vector<2x32xf32>
    %252 = math.tanh %251 : vector<2x32xf32>
    %253 = arith.mulf %248, %252 : vector<2x32xf32>
    %254 = vector.extract_strided_slice %171 {offsets = [8, 0], sizes = [2, 128], strides = [1, 1]} : vector<16x128xf32> to vector<2x128xf32>
    %255 = arith.truncf %253 : vector<2x32xf32> to vector<2x32xbf16>
    %cst_37 = arith.constant dense<0.000000e+00> : vector<2x128xf32>
    %256 = tpu.matmul %255, %165, %cst_37 {dimension_numbers = #tpu.dot_dimension_numbers<[1], [0], [0], [1], [0, 0, 1, 1], [], []>} : vector<2x32xbf16>, vector<32x128xbf16>, vector<2x128xf32> -> vector<2x128xf32>
    %257 = arith.addf %254, %256 : vector<2x128xf32>
    %258 = vector.extract_strided_slice %257 {offsets = [0, 0], sizes = [2, 96], strides = [1, 1]} : vector<2x128xf32> to vector<2x96xf32>
    %259 = arith.negf %258 : vector<2x96xf32>
    %260 = math.exp %259 : vector<2x96xf32>
    %cst_38 = arith.constant 1.000000e+00 : f32
    %261 = vector.broadcast %cst_38 : f32 to vector<2x96xf32>
    %262 = arith.addf %261, %260 : vector<2x96xf32>
    %263 = arith.divf %261, %262 : vector<2x96xf32>
    %264 = vector.extract_strided_slice %257 {offsets = [0, 96], sizes = [2, 32], strides = [1, 1]} : vector<2x128xf32> to vector<2x32xf32>
    %265 = math.tanh %264 : vector<2x32xf32>
    %266 = vector.extract_strided_slice %263 {offsets = [0, 0], sizes = [2, 32], strides = [1, 1]} : vector<2x96xf32> to vector<2x32xf32>
    %267 = vector.extract_strided_slice %263 {offsets = [0, 32], sizes = [2, 32], strides = [1, 1]} : vector<2x96xf32> to vector<2x32xf32>
    %268 = vector.extract_strided_slice %263 {offsets = [0, 64], sizes = [2, 32], strides = [1, 1]} : vector<2x96xf32> to vector<2x32xf32>
    %269 = arith.mulf %267, %251 : vector<2x32xf32>
    %270 = arith.mulf %266, %265 : vector<2x32xf32>
    %271 = arith.addf %269, %270 : vector<2x32xf32>
    %272 = math.tanh %271 : vector<2x32xf32>
    %273 = arith.mulf %268, %272 : vector<2x32xf32>
    %274 = vector.extract_strided_slice %171 {offsets = [10, 0], sizes = [2, 128], strides = [1, 1]} : vector<16x128xf32> to vector<2x128xf32>
    %275 = arith.truncf %273 : vector<2x32xf32> to vector<2x32xbf16>
    %cst_39 = arith.constant dense<0.000000e+00> : vector<2x128xf32>
    %276 = tpu.matmul %275, %165, %cst_39 {dimension_numbers = #tpu.dot_dimension_numbers<[1], [0], [0], [1], [0, 0, 1, 1], [], []>} : vector<2x32xbf16>, vector<32x128xbf16>, vector<2x128xf32> -> vector<2x128xf32>
    %277 = arith.addf %274, %276 : vector<2x128xf32>
    %278 = vector.extract_strided_slice %277 {offsets = [0, 0], sizes = [2, 96], strides = [1, 1]} : vector<2x128xf32> to vector<2x96xf32>
    %279 = arith.negf %278 : vector<2x96xf32>
    %280 = math.exp %279 : vector<2x96xf32>
    %cst_40 = arith.constant 1.000000e+00 : f32
    %281 = vector.broadcast %cst_40 : f32 to vector<2x96xf32>
    %282 = arith.addf %281, %280 : vector<2x96xf32>
    %283 = arith.divf %281, %282 : vector<2x96xf32>
    %284 = vector.extract_strided_slice %277 {offsets = [0, 96], sizes = [2, 32], strides = [1, 1]} : vector<2x128xf32> to vector<2x32xf32>
    %285 = math.tanh %284 : vector<2x32xf32>
    %286 = vector.extract_strided_slice %283 {offsets = [0, 0], sizes = [2, 32], strides = [1, 1]} : vector<2x96xf32> to vector<2x32xf32>
    %287 = vector.extract_strided_slice %283 {offsets = [0, 32], sizes = [2, 32], strides = [1, 1]} : vector<2x96xf32> to vector<2x32xf32>
    %288 = vector.extract_strided_slice %283 {offsets = [0, 64], sizes = [2, 32], strides = [1, 1]} : vector<2x96xf32> to vector<2x32xf32>
    %289 = arith.mulf %287, %271 : vector<2x32xf32>
    %290 = arith.mulf %286, %285 : vector<2x32xf32>
    %291 = arith.addf %289, %290 : vector<2x32xf32>
    %292 = math.tanh %291 : vector<2x32xf32>
    %293 = arith.mulf %288, %292 : vector<2x32xf32>
    %294 = vector.extract_strided_slice %171 {offsets = [12, 0], sizes = [2, 128], strides = [1, 1]} : vector<16x128xf32> to vector<2x128xf32>
    %295 = arith.truncf %293 : vector<2x32xf32> to vector<2x32xbf16>
    %cst_41 = arith.constant dense<0.000000e+00> : vector<2x128xf32>
    %296 = tpu.matmul %295, %165, %cst_41 {dimension_numbers = #tpu.dot_dimension_numbers<[1], [0], [0], [1], [0, 0, 1, 1], [], []>} : vector<2x32xbf16>, vector<32x128xbf16>, vector<2x128xf32> -> vector<2x128xf32>
    %297 = arith.addf %294, %296 : vector<2x128xf32>
    %298 = vector.extract_strided_slice %297 {offsets = [0, 0], sizes = [2, 96], strides = [1, 1]} : vector<2x128xf32> to vector<2x96xf32>
    %299 = arith.negf %298 : vector<2x96xf32>
    %300 = math.exp %299 : vector<2x96xf32>
    %cst_42 = arith.constant 1.000000e+00 : f32
    %301 = vector.broadcast %cst_42 : f32 to vector<2x96xf32>
    %302 = arith.addf %301, %300 : vector<2x96xf32>
    %303 = arith.divf %301, %302 : vector<2x96xf32>
    %304 = vector.extract_strided_slice %297 {offsets = [0, 96], sizes = [2, 32], strides = [1, 1]} : vector<2x128xf32> to vector<2x32xf32>
    %305 = math.tanh %304 : vector<2x32xf32>
    %306 = vector.extract_strided_slice %303 {offsets = [0, 0], sizes = [2, 32], strides = [1, 1]} : vector<2x96xf32> to vector<2x32xf32>
    %307 = vector.extract_strided_slice %303 {offsets = [0, 32], sizes = [2, 32], strides = [1, 1]} : vector<2x96xf32> to vector<2x32xf32>
    %308 = vector.extract_strided_slice %303 {offsets = [0, 64], sizes = [2, 32], strides = [1, 1]} : vector<2x96xf32> to vector<2x32xf32>
    %309 = arith.mulf %307, %291 : vector<2x32xf32>
    %310 = arith.mulf %306, %305 : vector<2x32xf32>
    %311 = arith.addf %309, %310 : vector<2x32xf32>
    %312 = math.tanh %311 : vector<2x32xf32>
    %313 = arith.mulf %308, %312 : vector<2x32xf32>
    %314 = vector.extract_strided_slice %171 {offsets = [14, 0], sizes = [2, 128], strides = [1, 1]} : vector<16x128xf32> to vector<2x128xf32>
    %315 = arith.truncf %313 : vector<2x32xf32> to vector<2x32xbf16>
    %cst_43 = arith.constant dense<0.000000e+00> : vector<2x128xf32>
    %316 = tpu.matmul %315, %165, %cst_43 {dimension_numbers = #tpu.dot_dimension_numbers<[1], [0], [0], [1], [0, 0, 1, 1], [], []>} : vector<2x32xbf16>, vector<32x128xbf16>, vector<2x128xf32> -> vector<2x128xf32>
    %317 = arith.addf %314, %316 : vector<2x128xf32>
    %318 = vector.extract_strided_slice %317 {offsets = [0, 0], sizes = [2, 96], strides = [1, 1]} : vector<2x128xf32> to vector<2x96xf32>
    %319 = arith.negf %318 : vector<2x96xf32>
    %320 = math.exp %319 : vector<2x96xf32>
    %cst_44 = arith.constant 1.000000e+00 : f32
    %321 = vector.broadcast %cst_44 : f32 to vector<2x96xf32>
    %322 = arith.addf %321, %320 : vector<2x96xf32>
    %323 = arith.divf %321, %322 : vector<2x96xf32>
    %324 = vector.extract_strided_slice %317 {offsets = [0, 96], sizes = [2, 32], strides = [1, 1]} : vector<2x128xf32> to vector<2x32xf32>
    %325 = math.tanh %324 : vector<2x32xf32>
    %326 = vector.extract_strided_slice %323 {offsets = [0, 0], sizes = [2, 32], strides = [1, 1]} : vector<2x96xf32> to vector<2x32xf32>
    %327 = vector.extract_strided_slice %323 {offsets = [0, 32], sizes = [2, 32], strides = [1, 1]} : vector<2x96xf32> to vector<2x32xf32>
    %328 = vector.extract_strided_slice %323 {offsets = [0, 64], sizes = [2, 32], strides = [1, 1]} : vector<2x96xf32> to vector<2x32xf32>
    %329 = arith.mulf %327, %311 : vector<2x32xf32>
    %330 = arith.mulf %326, %325 : vector<2x32xf32>
    %331 = arith.addf %329, %330 : vector<2x32xf32>
    %332 = math.tanh %331 : vector<2x32xf32>
    %333 = arith.mulf %328, %332 : vector<2x32xf32>
    %334 = tpu.concatenate %193, %213, %233, %253, %273, %293, %313, %333 in 1 : vector<2x32xf32>, vector<2x32xf32>, vector<2x32xf32>, vector<2x32xf32>, vector<2x32xf32>, vector<2x32xf32>, vector<2x32xf32>, vector<2x32xf32> -> vector<2x256xf32>
    %c0_45 = arith.constant 0 : index
    %c0_46 = arith.constant 0 : index
    %335 = vector.load %arg6[%c0_45, %c0_46] : memref<2x256xf32, #tpu.memory_space<vmem>>, vector<2x256xf32>
    tpu.vector_store %arg6[%c0_45, %c0_46], %334 {strides = array<i32>} : memref<2x256xf32, #tpu.memory_space<vmem>>, vector<2x256xf32>,
    return
  }
  func.func @transform_0(%arg0: i32) -> (i32, i32) {
    %c0_i32 = arith.constant 0 : i32
    %c0_i32_0 = arith.constant 0 : i32
    %c0_i32_1 = arith.constant 0 : i32
    return %c0_i32, %c0_i32_0 : i32, i32
  }
  func.func @transform_1(%arg0: i32) -> (i32, i32) {
    %c0_i32 = arith.constant 0 : i32
    %c0_i32_0 = arith.constant 0 : i32
    %c0_i32_1 = arith.constant 0 : i32
    return %c0_i32, %c0_i32_0 : i32, i32
  }
  func.func @transform_2(%arg0: i32) -> (i32, i32) {
    %c0_i32 = arith.constant 0 : i32
    %c0_i32_0 = arith.constant 0 : i32
    %c0_i32_1 = arith.constant 0 : i32
    return %c0_i32, %c0_i32_0 : i32, i32
  }
  func.func @transform_3(%arg0: i32) -> (i32, i32) {
    %c0_i32 = arith.constant 0 : i32
    %c0_i32_0 = arith.constant 0 : i32
    %c0_i32_1 = arith.constant 0 : i32
    return %c0_i32, %c0_i32_0 : i32, i32
  }
  func.func @transform_4(%arg0: i32) -> (i32, i32) {
    %c0_i32 = arith.constant 0 : i32
    %c0_i32_0 = arith.constant 0 : i32
    %c0_i32_1 = arith.constant 0 : i32
    return %c0_i32, %c0_i32_0 : i32, i32
  }
  func.func @transform_5(%arg0: i32) -> (i32, i32) {
    %c0_i32 = arith.constant 0 : i32
    %c0_i32_0 = arith.constant 0 : i32
    %c0_i32_1 = arith.constant 0 : i32
    return %c0_i32, %c0_i32_0 : i32, i32
  }
}

</mosaic_0001>

<llo_original>
// kernel: tpu_custom_call.1
$region0: #{tpu_custom_call.1}
  #allocation0 [shape = 'u32[]', space=smem, size = 0x4, offset = 0x4, fixed_abs, tag = 'smem constant byte address 0x4 - core index']
  #allocation1 [shape = 'u32[72,128]{1,0:T(1,128)}', space=vmem, size = 0x9000, scoped, tag = 'internal scratch']
  %s0 = inlined_call_operand.hbm [shape: f32[16,128], index: 0, kind: input, shape index: {}]
  %s1 = inlined_call_operand.hbm [shape: bf16[32,128], index: 1, kind: input, shape index: {}]
  %s2 = inlined_call_operand.hbm [shape: bf16[32,128], index: 2, kind: input, shape index: {}]
  %s3 = inlined_call_operand.hbm [shape: bf16[32,128], index: 3, kind: input, shape index: {}]
  %s4 = inlined_call_operand.vmem [shape: f32[1,128], index: 4, kind: input, shape index: {}]
  %s5 = inlined_call_operand.hbm [shape: f32[2,256], index: 5, kind: output, shape index: {}]
  %s6 = sld [smem:[#allocation0]]
  $region46: #{tpu_custom_call.1} parent=0
    _
  %s8 = ssub.s32 1, %s6
  %s9 = scalar_select 0, %s8, %s6
  $region1: #{tpu_custom_call.1} parent=0
    #allocation2 [shape = 'u8[8192]{0}', space=vmem, size = 0x2000, scoped, tag = 'input window, operand 0, single buffered']
    #allocation3 [shape = 's32[1]{0}', space=sflag, size = 0x4, scoped, tag = 'scoped memory for tpu_custom_call.1']
    #allocation4 [shape = 's32[1]{0}', space=sflag, size = 0x4, scoped, tag = 'scoped memory for tpu_custom_call.1']
    #allocation5 [shape = 'u8[8192]{0}', space=vmem, size = 0x2000, scoped, tag = 'input window, operand 1, single buffered']
    #allocation6 [shape = 's32[1]{0}', space=sflag, size = 0x4, scoped, tag = 'scoped memory for tpu_custom_call.1']
    #allocation7 [shape = 'u8[8192]{0}', space=vmem, size = 0x2000, scoped, tag = 'input window, operand 2, single buffered']
    #allocation8 [shape = 'u8[8192]{0}', space=vmem, size = 0x2000, scoped, tag = 'input window, operand 3, single buffered']
    #allocation9 [shape = 's32[1]{0}', space=sflag, size = 0x4, scoped, tag = 'scoped memory for tpu_custom_call.1']
    #allocation10 [shape = 'u8[2048]{0}', space=vmem, size = 0x800, scoped, tag = 'output window, operand 0, single buffered']
    %10 = vsyncpa [#allocation3], 0
    %11 = vsyncpa [#allocation6], 0
    %12 = vsyncpa [#allocation9], 0
    %13 = vsyncpa [#allocation4], 0
    // Predicated region
    $region2: #{tpu_custom_call.1} parent=1 // pred_check
      _
    $region3: #{tpu_custom_call.1} parent=1 // pred_check_branch
      %15 = sbr.rel (0) target = $region5
    $region4: #{tpu_custom_call.1} parent=1 // pred_region
      %17 = vsyncadd [#allocation3], 0
      %s18 = sshll.u32 %s0, 4
      %s19 = int_to_ptr.hbm [resolvable:$true] %s18
      %s20 = sshll.u32 [#allocation2], 4
      %s21 = int_to_ptr.vmem [resolvable:$true] %s20
      %26 = dma.hbm_to_vmem [thread:$0]  %s19, 256, %s21, [#allocation3], 128, 128, 8
    $region5: #{tpu_custom_call.1} parent=1 // pred_fallthru
      _
    // Predicated region
    $region6: #{tpu_custom_call.1} parent=1 // pred_check
      _
    $region7: #{tpu_custom_call.1} parent=1 // pred_check_branch
      %28 = sbr.rel (0) target = $region9
    $region8: #{tpu_custom_call.1} parent=1 // pred_region
      %30 = vsyncadd [#allocation6], 0
      %s31 = sshll.u32 %s1, 4
      %s32 = int_to_ptr.hbm [resolvable:$true] %s31
      %s33 = sshll.u32 [#allocation5], 4
      %s34 = int_to_ptr.vmem [resolvable:$true] %s33
      %39 = dma.hbm_to_vmem [thread:$0]  %s32, 256, %s34, [#allocation6], 64, 64, 4
    $region9: #{tpu_custom_call.1} parent=1 // pred_fallthru
      _
    // Predicated region
    $region10: #{tpu_custom_call.1} parent=1 // pred_check
      _
    $region11: #{tpu_custom_call.1} parent=1 // pred_check_branch
      %41 = sbr.rel (0) target = $region13
    $region12: #{tpu_custom_call.1} parent=1 // pred_region
      %43 = vsyncadd [#allocation6], 0
      %s44 = sshll.u32 %s2, 4
      %s45 = int_to_ptr.hbm [resolvable:$true] %s44
      %s46 = sshll.u32 [#allocation7], 4
      %s47 = int_to_ptr.vmem [resolvable:$true] %s46
      %52 = dma.hbm_to_vmem [thread:$0]  %s45, 256, %s47, [#allocation6], 64, 64, 4
    $region13: #{tpu_custom_call.1} parent=1 // pred_fallthru
      _
    // Predicated region
    $region14: #{tpu_custom_call.1} parent=1 // pred_check
      _
    $region15: #{tpu_custom_call.1} parent=1 // pred_check_branch
      %54 = sbr.rel (0) target = $region17
    $region16: #{tpu_custom_call.1} parent=1 // pred_region
      %56 = vsyncadd [#allocation9], 0
      %s57 = sshll.u32 %s3, 4
      %s58 = int_to_ptr.hbm [resolvable:$true] %s57
      %s59 = sshll.u32 [#allocation8], 4
      %s60 = int_to_ptr.vmem [resolvable:$true] %s59
      %65 = dma.hbm_to_vmem [thread:$0]  %s58, 256, %s60, [#allocation9], 64, 64, 4
    $region17: #{tpu_custom_call.1} parent=1 // pred_fallthru
      _
    // Predicated region
    $region18: #{tpu_custom_call.1} parent=1 // pred_check
      _
    $region19: #{tpu_custom_call.1} parent=1 // pred_check_branch
      %67 = sbr.rel (0) target = $region21
    $region20: #{tpu_custom_call.1} parent=1 // pred_region
      _
    $region21: #{tpu_custom_call.1} parent=1 // pred_fallthru
      _
    // Predicated region
    $region22: #{tpu_custom_call.1} parent=1 // pred_check
      _
    $region23: #{tpu_custom_call.1} parent=1 // pred_check_branch
      %69 = sbr.rel (0) target = $region25
    $region24: #{tpu_custom_call.1} parent=1 // pred_region
      %71 = dma.done [#allocation3], 256
    $region25: #{tpu_custom_call.1} parent=1 // pred_fallthru
      _
    // Predicated region
    $region26: #{tpu_custom_call.1} parent=1 // pred_check
      _
    $region27: #{tpu_custom_call.1} parent=1 // pred_check_branch
      %73 = sbr.rel (0) target = $region29
    $region28: #{tpu_custom_call.1} parent=1 // pred_region
      %75 = dma.done [#allocation6], 256
    $region29: #{tpu_custom_call.1} parent=1 // pred_fallthru
      _
    // Predicated region
    $region30: #{tpu_custom_call.1} parent=1 // pred_check
      _
    $region31: #{tpu_custom_call.1} parent=1 // pred_check_branch
      %77 = sbr.rel (0) target = $region33
    $region32: #{tpu_custom_call.1} parent=1 // pred_region
      %79 = dma.done [#allocation6], 256
    $region33: #{tpu_custom_call.1} parent=1 // pred_fallthru
      _
    // Predicated region
    $region34: #{tpu_custom_call.1} parent=1 // pred_check
      _
    $region35: #{tpu_custom_call.1} parent=1 // pred_check_branch
      %81 = sbr.rel (0) target = $region37
    $region36: #{tpu_custom_call.1} parent=1 // pred_region
      %83 = dma.done [#allocation9], 256
    $region37: #{tpu_custom_call.1} parent=1 // pred_fallthru
      _
    %v85 = vld [vmem:[#allocation2] sm:$0xff]
    %v86 = vld [vmem:[#allocation2 + $0x8] sm:$0xff]
    %v87 = vld [vmem:[#allocation5] sm:$0xf]
    %v88 = vld [vmem:[#allocation5 + $0x4] sm:$0xf]
    %v89 = vld [vmem:[#allocation5 + $0x8] sm:$0xf]
    %v90 = vld [vmem:[#allocation5 + $0xc] sm:$0xf]
    %v95 = vunpack.c.l.b16 %v87
    %v96 = vunpack.c.l.b16 %v88
    %v97 = vunpack.c.l.b16 %v89
    %v98 = vunpack.c.l.b16 %v90
    %v99 = vpack.c.b16 %v96, %v95
    %v100 = vpack.c.b16 %v98, %v97
    %vm103 = vcmask 261120
    %v105 = vsel %vm103, 0, 0
    %107 = vmatpush.bf16.msra.mxu0 0
    %108 = vmatpush.bf16.msra.mxu0 0
    %109 = vmatpush.bf16.msra.mxu0 0
    %110 = vmatpush.bf16.msra.mxu0 0
    %111 = vmatpush.bf16.msra.mxu0 0
    %112 = vmatpush.bf16.msra.mxu0 0
    %113 = vmatpush.bf16.msra.mxu0 %v100
    %114 = vmatpush.bf16.msra.mxu0 %v99
    %115 = vmatmul.bf16.gmra.mxu0 %v105
    %v116 = vpop.f32.mrf.mxu0
    %v117 = vadd.f32 0.0, %v116
    %v118 = vpop.f32.mrf.mxu0
    %119 = vdwg.mxu0
    %v120 = vadd.f32 %v85, %v117
    %v121 = vxor.u32 %v120, 2147483648
    %v122 = vmul.f32 %v121, 1.442695
    %v123 = vpow.pop %v122
    %v124 = vadd.f32 %v123, 1.0
    %v125 = vrcp.pop %v124
    %v126 = vmul.f32 %v124, %v125
    %v127 = vsub.f32 1.0, %v126
    %v128 = vmul.f32 %v125, %v127
    %v129 = vadd.f32 %v125, %v128
    %vm130 = vweird.f32 %v124
    %vm131 = vweird.f32 %v125
    %vm132 = vmor %vm130, %vm131
    %v133 = vsel %vm132, %v125, %v129
    %v134 = vand.u32 2147483647, %v124
    %vm135 = vcmp.eq.f32.partialorder %v134, 8.507059e+37
    %v136 = vand.u32 %v124, 2147483648
    %v137 = vor.u32 1.1754944e-38, %v136
    %v138 = vsel %vm135, %v137, %v133
    %v139 = vmul.f32 1.0, %v138
    %v140 = vtanh.pop %v120
    %v141 = vmul.f32 %v139, 0.0
    %143 = vrot.lane.b32.xlu0 %v140, 32
    %v144 = vpop.permute.xlu0 %143
    %v146 = vmul.f32 %v139, %v144
    %148 = vrot.lane.b32.xlu0 %v146, 32
    %v149 = vpop.permute.xlu0 %148
    %v151 = vadd.f32 %v141, %v149
    %v152 = vtanh.pop %v151
    %154 = vrot.lane.b32.xlu0 %v152, 32
    %v155 = vpop.permute.xlu0 %154
    %v157 = vmul.f32 %v139, %v155
    %v158 = vpack.c.bf16 %v157, %v157
    %160 = vrot.lane.b32.xlu0 %v158, 64
    %v161 = vpop.permute.xlu0 %160
    %v163 = vsel %vm103, %v161, 0
    %165 = vmatpush.bf16.msra.mxu0 0
    %166 = vmatpush.bf16.msra.mxu0 0
    %167 = vmatpush.bf16.msra.mxu0 0
    %168 = vmatpush.bf16.msra.mxu0 0
    %169 = vmatpush.bf16.msra.mxu0 0
    %170 = vmatpush.bf16.msra.mxu0 0
    %171 = vmatpush.bf16.msra.mxu0 %v100
    %172 = vmatpush.bf16.msra.mxu0 %v99
    %173 = vmatmul.bf16.gmra.mxu0 %v163
    %v174 = vpop.f32.mrf.mxu0
    %v175 = vadd.f32 0.0, %v174
    %v176 = vpop.f32.mrf.mxu0
    %177 = vdwg.mxu0
    %v179 = vrot.slane %v175, 6
    %v181 = vadd.f32 %v85, %v179
    %v182 = vxor.u32 %v181, 2147483648
    %v183 = vmul.f32 %v182, 1.442695
    %v184 = vpow.pop %v183
    %v185 = vadd.f32 %v184, 1.0
    %v186 = vrcp.pop %v185
    %v187 = vmul.f32 %v185, %v186
    %v188 = vsub.f32 1.0, %v187
    %v189 = vmul.f32 %v186, %v188
    %v190 = vadd.f32 %v186, %v189
    %vm191 = vweird.f32 %v185
    %vm192 = vweird.f32 %v186
    %vm193 = vmor %vm191, %vm192
    %v194 = vsel %vm193, %v186, %v190
    %v195 = vand.u32 2147483647, %v185
    %vm196 = vcmp.eq.f32.partialorder %v195, 8.507059e+37
    %v197 = vand.u32 %v185, 2147483648
    %v198 = vor.u32 1.1754944e-38, %v197
    %v199 = vsel %vm196, %v198, %v194
    %v200 = vmul.f32 1.0, %v199
    %v201 = vtanh.pop %v181
    %v203 = vrot.slane %v151, 6
    %v205 = vmul.f32 %v200, %v203
    %207 = vrot.lane.b32.xlu0 %v201, 32
    %v208 = vpop.permute.xlu0 %207
    %v210 = vmul.f32 %v200, %v208
    %212 = vrot.lane.b32.xlu0 %v210, 32
    %v213 = vpop.permute.xlu0 %212
    %v215 = vadd.f32 %v205, %v213
    %v216 = vtanh.pop %v215
    %218 = vrot.lane.b32.xlu0 %v216, 32
    %v219 = vpop.permute.xlu0 %218
    %v221 = vmul.f32 %v200, %v219
    %v222 = vpack.c.bf16 %v221, %v221
    %v224 = vrot.slane %v222, 1
    %225 = vrot.lane.b32.xlu0 %v224, 64
    %v226 = vpop.permute.xlu0 %225
    %v228 = vsel %vm103, %v226, 0
    %230 = vmatpush.bf16.msra.mxu0 0
    %231 = vmatpush.bf16.msra.mxu0 0
    %232 = vmatpush.bf16.msra.mxu0 0
    %233 = vmatpush.bf16.msra.mxu0 0
    %234 = vmatpush.bf16.msra.mxu0 0
    %235 = vmatpush.bf16.msra.mxu0 0
    %236 = vmatpush.bf16.msra.mxu0 %v100
    %237 = vmatpush.bf16.msra.mxu0 %v99
    %238 = vmatmul.bf16.gmra.mxu0 %v228
    %v239 = vpop.f32.mrf.mxu0
    %v240 = vadd.f32 0.0, %v239
    %v241 = vpop.f32.mrf.mxu0
    %242 = vdwg.mxu0
    %v244 = vrot.slane %v240, 4
    %v246 = vadd.f32 %v85, %v244
    %v247 = vxor.u32 %v246, 2147483648
    %v248 = vmul.f32 %v247, 1.442695
    %v249 = vpow.pop %v248
    %v250 = vadd.f32 %v249, 1.0
    %v251 = vrcp.pop %v250
    %v252 = vmul.f32 %v250, %v251
    %v253 = vsub.f32 1.0, %v252
    %v254 = vmul.f32 %v251, %v253
    %v255 = vadd.f32 %v251, %v254
    %vm256 = vweird.f32 %v250
    %vm257 = vweird.f32 %v251
    %vm258 = vmor %vm256, %vm257
    %v259 = vsel %vm258, %v251, %v255
    %v260 = vand.u32 2147483647, %v250
    %vm261 = vcmp.eq.f32.partialorder %v260, 8.507059e+37
    %v262 = vand.u32 %v250, 2147483648
    %v263 = vor.u32 1.1754944e-38, %v262
    %v264 = vsel %vm261, %v263, %v259
    %v265 = vmul.f32 1.0, %v264
    %v266 = vtanh.pop %v246
    %v268 = vrot.slane %v215, 6
    %v270 = vmul.f32 %v265, %v268
    %272 = vrot.lane.b32.xlu0 %v266, 32
    %v273 = vpop.permute.xlu0 %272
    %v275 = vmul.f32 %v265, %v273
    %277 = vrot.lane.b32.xlu0 %v275, 32
    %v278 = vpop.permute.xlu0 %277
    %v280 = vadd.f32 %v270, %v278
    %v281 = vtanh.pop %v280
    %283 = vrot.lane.b32.xlu0 %v281, 32
    %v284 = vpop.permute.xlu0 %283
    %v286 = vmul.f32 %v265, %v284
    %v287 = vpack.c.bf16 %v286, %v286
    %v289 = vrot.slane %v287, 2
    %290 = vrot.lane.b32.xlu0 %v289, 64
    %v291 = vpop.permute.xlu0 %290
    %v293 = vsel %vm103, %v291, 0
    %295 = vmatpush.bf16.msra.mxu0 0
    %296 = vmatpush.bf16.msra.mxu0 0
    %297 = vmatpush.bf16.msra.mxu0 0
    %298 = vmatpush.bf16.msra.mxu0 0
    %299 = vmatpush.bf16.msra.mxu0 0
    %300 = vmatpush.bf16.msra.mxu0 0
    %301 = vmatpush.bf16.msra.mxu0 %v100
    %302 = vmatpush.bf16.msra.mxu0 %v99
    %303 = vmatmul.bf16.gmra.mxu0 %v293
    %v304 = vpop.f32.mrf.mxu0
    %v305 = vadd.f32 0.0, %v304
    %v306 = vpop.f32.mrf.mxu0
    %307 = vdwg.mxu0
    %v309 = vrot.slane %v305, 2
    %v311 = vadd.f32 %v85, %v309
    %v312 = vxor.u32 %v311, 2147483648
    %v313 = vmul.f32 %v312, 1.442695
    %v314 = vpow.pop %v313
    %v315 = vadd.f32 %v314, 1.0
    %v316 = vrcp.pop %v315
    %v317 = vmul.f32 %v315, %v316
    %v318 = vsub.f32 1.0, %v317
    %v319 = vmul.f32 %v316, %v318
    %v320 = vadd.f32 %v316, %v319
    %vm321 = vweird.f32 %v315
    %vm322 = vweird.f32 %v316
    %vm323 = vmor %vm321, %vm322
    %v324 = vsel %vm323, %v316, %v320
    %v325 = vand.u32 2147483647, %v315
    %vm326 = vcmp.eq.f32.partialorder %v325, 8.507059e+37
    %v327 = vand.u32 %v315, 2147483648
    %v328 = vor.u32 1.1754944e-38, %v327
    %v329 = vsel %vm326, %v328, %v324
    %v330 = vmul.f32 1.0, %v329
    %v331 = vtanh.pop %v311
    %v333 = vrot.slane %v280, 6
    %v335 = vmul.f32 %v330, %v333
    %337 = vrot.lane.b32.xlu0 %v331, 32
    %v338 = vpop.permute.xlu0 %337
    %v340 = vmul.f32 %v330, %v338
    %342 = vrot.lane.b32.xlu0 %v340, 32
    %v343 = vpop.permute.xlu0 %342
    %v345 = vadd.f32 %v335, %v343
    %v346 = vtanh.pop %v345
    %348 = vrot.lane.b32.xlu0 %v346, 32
    %v349 = vpop.permute.xlu0 %348
    %v351 = vmul.f32 %v330, %v349
    %v352 = vpack.c.bf16 %v351, %v351
    %v354 = vrot.slane %v352, 3
    %355 = vrot.lane.b32.xlu0 %v354, 64
    %v356 = vpop.permute.xlu0 %355
    %v358 = vsel %vm103, %v356, 0
    %360 = vmatpush.bf16.msra.mxu0 0
    %361 = vmatpush.bf16.msra.mxu0 0
    %362 = vmatpush.bf16.msra.mxu0 0
    %363 = vmatpush.bf16.msra.mxu0 0
    %364 = vmatpush.bf16.msra.mxu0 0
    %365 = vmatpush.bf16.msra.mxu0 0
    %366 = vmatpush.bf16.msra.mxu0 %v100
    %367 = vmatpush.bf16.msra.mxu0 %v99
    %368 = vmatmul.bf16.gmra.mxu0 %v358
    %v369 = vpop.f32.mrf.mxu0
    %v370 = vadd.f32 0.0, %v369
    %v371 = vpop.f32.mrf.mxu0
    %372 = vdwg.mxu0
    %v373 = vadd.f32 %v86, %v370
    %v374 = vxor.u32 %v373, 2147483648
    %v375 = vmul.f32 %v374, 1.442695
    %v376 = vpow.pop %v375
    %v377 = vadd.f32 %v376, 1.0
    %v378 = vrcp.pop %v377
    %v379 = vmul.f32 %v377, %v378
    %v380 = vsub.f32 1.0, %v379
    %v381 = vmul.f32 %v378, %v380
    %v382 = vadd.f32 %v378, %v381
    %vm383 = vweird.f32 %v377
    %vm384 = vweird.f32 %v378
    %vm385 = vmor %vm383, %vm384
    %v386 = vsel %vm385, %v378, %v382
    %v387 = vand.u32 2147483647, %v377
    %vm388 = vcmp.eq.f32.partialorder %v387, 8.507059e+37
    %v389 = vand.u32 %v377, 2147483648
    %v390 = vor.u32 1.1754944e-38, %v389
    %v391 = vsel %vm388, %v390, %v386
    %v392 = vmul.f32 1.0, %v391
    %v393 = vtanh.pop %v373
    %v395 = vrot.slane %v345, 6
    %v397 = vmul.f32 %v392, %v395
    %399 = vrot.lane.b32.xlu0 %v393, 32
    %v400 = vpop.permute.xlu0 %399
    %v402 = vmul.f32 %v392, %v400
    %404 = vrot.lane.b32.xlu0 %v402, 32
    %v405 = vpop.permute.xlu0 %404
    %v407 = vadd.f32 %v397, %v405
    %v408 = vtanh.pop %v407
    %410 = vrot.lane.b32.xlu0 %v408, 32
    %v411 = vpop.permute.xlu0 %410
    %v413 = vmul.f32 %v392, %v411
    %v414 = vpack.c.bf16 %v413, %v413
    %416 = vrot.lane.b32.xlu0 %v414, 64
    %v417 = vpop.permute.xlu0 %416
    %v419 = vsel %vm103, %v417, 0
    %421 = vmatpush.bf16.msra.mxu0 0
    %422 = vmatpush.bf16.msra.mxu0 0
    %423 = vmatpush.bf16.msra.mxu0 0
    %424 = vmatpush.bf16.msra.mxu0 0
    %425 = vmatpush.bf16.msra.mxu0 0
    %426 = vmatpush.bf16.msra.mxu0 0
    %427 = vmatpush.bf16.msra.mxu0 %v100
    %428 = vmatpush.bf16.msra.mxu0 %v99
    %429 = vmatmul.bf16.gmra.mxu0 %v419
    %v430 = vpop.f32.mrf.mxu0
    %v431 = vadd.f32 0.0, %v430
    %v432 = vpop.f32.mrf.mxu0
    %433 = vdwg.mxu0
    %v435 = vrot.slane %v431, 6
    %v437 = vadd.f32 %v86, %v435
    %v438 = vxor.u32 %v437, 2147483648
    %v439 = vmul.f32 %v438, 1.442695
    %v440 = vpow.pop %v439
    %v441 = vadd.f32 %v440, 1.0
    %v442 = vrcp.pop %v441
    %v443 = vmul.f32 %v441, %v442
    %v444 = vsub.f32 1.0, %v443
    %v445 = vmul.f32 %v442, %v444
    %v446 = vadd.f32 %v442, %v445
    %vm447 = vweird.f32 %v441
    %vm448 = vweird.f32 %v442
    %vm449 = vmor %vm447, %vm448
    %v450 = vsel %vm449, %v442, %v446
    %v451 = vand.u32 2147483647, %v441
    %vm452 = vcmp.eq.f32.partialorder %v451, 8.507059e+37
    %v453 = vand.u32 %v441, 2147483648
    %v454 = vor.u32 1.1754944e-38, %v453
    %v455 = vsel %vm452, %v454, %v450
    %v456 = vmul.f32 1.0, %v455
    %v457 = vtanh.pop %v437
    %v459 = vrot.slane %v407, 6
    %v461 = vmul.f32 %v456, %v459
    %463 = vrot.lane.b32.xlu0 %v457, 32
    %v464 = vpop.permute.xlu0 %463
    %v466 = vmul.f32 %v456, %v464
    %468 = vrot.lane.b32.xlu0 %v466, 32
    %v469 = vpop.permute.xlu0 %468
    %v471 = vadd.f32 %v461, %v469
    %v472 = vtanh.pop %v471
    %474 = vrot.lane.b32.xlu0 %v472, 32
    %v475 = vpop.permute.xlu0 %474
    %v477 = vmul.f32 %v456, %v475
    %v478 = vpack.c.bf16 %v477, %v477
    %v480 = vrot.slane %v478, 1
    %481 = vrot.lane.b32.xlu0 %v480, 64
    %v482 = vpop.permute.xlu0 %481
    %v484 = vsel %vm103, %v482, 0
    %486 = vmatpush.bf16.msra.mxu0 0
    %487 = vmatpush.bf16.msra.mxu0 0
    %488 = vmatpush.bf16.msra.mxu0 0
    %489 = vmatpush.bf16.msra.mxu0 0
    %490 = vmatpush.bf16.msra.mxu0 0
    %491 = vmatpush.bf16.msra.mxu0 0
    %492 = vmatpush.bf16.msra.mxu0 %v100
    %493 = vmatpush.bf16.msra.mxu0 %v99
    %494 = vmatmul.bf16.gmra.mxu0 %v484
    %v495 = vpop.f32.mrf.mxu0
    %v496 = vadd.f32 0.0, %v495
    %v497 = vpop.f32.mrf.mxu0
    %498 = vdwg.mxu0
    %v500 = vrot.slane %v496, 4
    %v502 = vadd.f32 %v86, %v500
    %v503 = vxor.u32 %v502, 2147483648
    %v504 = vmul.f32 %v503, 1.442695
    %v505 = vpow.pop %v504
    %v506 = vadd.f32 %v505, 1.0
    %v507 = vrcp.pop %v506
    %v508 = vmul.f32 %v506, %v507
    %v509 = vsub.f32 1.0, %v508
    %v510 = vmul.f32 %v507, %v509
    %v511 = vadd.f32 %v507, %v510
    %vm512 = vweird.f32 %v506
    %vm513 = vweird.f32 %v507
    %vm514 = vmor %vm512, %vm513
    %v515 = vsel %vm514, %v507, %v511
    %v516 = vand.u32 2147483647, %v506
    %vm517 = vcmp.eq.f32.partialorder %v516, 8.507059e+37
    %v518 = vand.u32 %v506, 2147483648
    %v519 = vor.u32 1.1754944e-38, %v518
    %v520 = vsel %vm517, %v519, %v515
    %v521 = vmul.f32 1.0, %v520
    %v522 = vtanh.pop %v502
    %v524 = vrot.slane %v471, 6
    %v526 = vmul.f32 %v521, %v524
    %528 = vrot.lane.b32.xlu0 %v522, 32
    %v529 = vpop.permute.xlu0 %528
    %v531 = vmul.f32 %v521, %v529
    %533 = vrot.lane.b32.xlu0 %v531, 32
    %v534 = vpop.permute.xlu0 %533
    %v536 = vadd.f32 %v526, %v534
    %v537 = vtanh.pop %v536
    %539 = vrot.lane.b32.xlu0 %v537, 32
    %v540 = vpop.permute.xlu0 %539
    %v542 = vmul.f32 %v521, %v540
    %v543 = vpack.c.bf16 %v542, %v542
    %v545 = vrot.slane %v543, 2
    %546 = vrot.lane.b32.xlu0 %v545, 64
    %v547 = vpop.permute.xlu0 %546
    %v549 = vsel %vm103, %v547, 0
    %551 = vmatpush.bf16.msra.mxu0 0
    %552 = vmatpush.bf16.msra.mxu0 0
    %553 = vmatpush.bf16.msra.mxu0 0
    %554 = vmatpush.bf16.msra.mxu0 0
    %555 = vmatpush.bf16.msra.mxu0 0
    %556 = vmatpush.bf16.msra.mxu0 0
    %557 = vmatpush.bf16.msra.mxu0 %v100
    %558 = vmatpush.bf16.msra.mxu0 %v99
    %559 = vmatmul.bf16.gmra.mxu0 %v549
    %v560 = vpop.f32.mrf.mxu0
    %v561 = vadd.f32 0.0, %v560
    %v562 = vpop.f32.mrf.mxu0
    %563 = vdwg.mxu0
    %v565 = vrot.slane %v561, 2
    %v567 = vadd.f32 %v86, %v565
    %v568 = vxor.u32 %v567, 2147483648
    %v569 = vmul.f32 %v568, 1.442695
    %v570 = vpow.pop %v569
    %v571 = vadd.f32 %v570, 1.0
    %v572 = vrcp.pop %v571
    %v573 = vmul.f32 %v571, %v572
    %v574 = vsub.f32 1.0, %v573
    %v575 = vmul.f32 %v572, %v574
    %v576 = vadd.f32 %v572, %v575
    %vm577 = vweird.f32 %v571
    %vm578 = vweird.f32 %v572
    %vm579 = vmor %vm577, %vm578
    %v580 = vsel %vm579, %v572, %v576
    %v581 = vand.u32 2147483647, %v571
    %vm582 = vcmp.eq.f32.partialorder %v581, 8.507059e+37
    %v583 = vand.u32 %v571, 2147483648
    %v584 = vor.u32 1.1754944e-38, %v583
    %v585 = vsel %vm582, %v584, %v580
    %v586 = vmul.f32 1.0, %v585
    %v587 = vtanh.pop %v567
    %v589 = vrot.slane %v536, 6
    %v591 = vmul.f32 %v586, %v589
    %593 = vrot.lane.b32.xlu0 %v587, 32
    %v594 = vpop.permute.xlu0 %593
    %v596 = vmul.f32 %v586, %v594
    %598 = vrot.lane.b32.xlu0 %v596, 32
    %v599 = vpop.permute.xlu0 %598
    %v601 = vadd.f32 %v591, %v599
    %v602 = vtanh.pop %v601
    %604 = vrot.lane.b32.xlu0 %v602, 32
    %v605 = vpop.permute.xlu0 %604
    %v607 = vmul.f32 %v586, %v605
    %v608 = vld [vmem:[#allocation7] sm:$0xf]
    %v609 = vld [vmem:[#allocation7 + $0x4] sm:$0xf]
    %v610 = vld [vmem:[#allocation7 + $0x8] sm:$0xf]
    %v611 = vld [vmem:[#allocation7 + $0xc] sm:$0xf]
    %v612 = vld [vmem:[#allocation8] sm:$0xf]
    %v613 = vld [vmem:[#allocation8 + $0x4] sm:$0xf]
    %v614 = vld [vmem:[#allocation8 + $0x8] sm:$0xf]
    %v615 = vld [vmem:[#allocation8 + $0xc] sm:$0xf]
    %v616 = vld [vmem:[%s4] sm:$0x1]
    %vm617 = vcmask 1041408
    %v618 = vsel %vm617, %v157, %v221
    %vm619 = vcmask 1043456
    %v620 = vsel %vm619, %v618, %v286
    %vm621 = vcmask 1045504
    %v622 = vsel %vm621, %v620, %v351
    %v623 = vsel %vm617, %v413, %v477
    %v624 = vsel %vm619, %v623, %v542
    %v625 = vsel %vm621, %v624, %v607
    %v626 = vpack.c.bf16 %v625, %v622
    %v628 = vperm.slane %v616, 0
    %631 = vrot.lane.b32.xlu0 %v626, 64
    %v632 = vpop.permute.xlu0 %631
    %v637 = vunpack.c.l.b16 %v608
    %v638 = vunpack.c.l.b16 %v609
    %v639 = vunpack.c.l.b16 %v610
    %v640 = vunpack.c.l.b16 %v611
    %v641 = vpack.c.b16 %v638, %v637
    %v642 = vpack.c.b16 %v640, %v639
    %v646 = vsel %vm103, %v632, 0
    %648 = vmatpush.bf16.msra.mxu0 0
    %649 = vmatpush.bf16.msra.mxu0 0
    %650 = vmatpush.bf16.msra.mxu0 0
    %651 = vmatpush.bf16.msra.mxu0 0
    %652 = vmatpush.bf16.msra.mxu0 0
    %653 = vmatpush.bf16.msra.mxu0 0
    %654 = vmatpush.bf16.msra.mxu0 %v642
    %655 = vmatpush.bf16.msra.mxu0 %v641
    %656 = vmatmul.bf16.gmra.mxu0 %v646
    %v657 = vpop.f32.mrf.mxu0
    %v658 = vadd.f32 %v628, %v657
    %v659 = vpop.f32.mrf.mxu0
    %v660 = vadd.f32 %v628, %v659
    %661 = vdwg.mxu0
    %v666 = vunpack.c.l.b16 %v612
    %v667 = vunpack.c.l.b16 %v613
    %v668 = vunpack.c.l.b16 %v614
    %v669 = vunpack.c.l.b16 %v615
    %v670 = vpack.c.b16 %v667, %v666
    %v671 = vpack.c.b16 %v669, %v668
    %674 = vmatpush.bf16.msra.mxu0 0
    %675 = vmatpush.bf16.msra.mxu0 0
    %676 = vmatpush.bf16.msra.mxu0 0
    %677 = vmatpush.bf16.msra.mxu0 0
    %678 = vmatpush.bf16.msra.mxu0 0
    %679 = vmatpush.bf16.msra.mxu0 0
    %680 = vmatpush.bf16.msra.mxu0 %v671
    %681 = vmatpush.bf16.msra.mxu0 %v670
    %682 = vmatmul.bf16.gmra.mxu0 %v105
    %v683 = vpop.f32.mrf.mxu0
    %v684 = vadd.f32 0.0, %v683
    %v685 = vpop.f32.mrf.mxu0
    %686 = vdwg.mxu0
    %v687 = vadd.f32 %v658, %v684
    %v688 = vxor.u32 %v687, 2147483648
    %v689 = vmul.f32 %v688, 1.442695
    %v690 = vpow.pop %v689
    %v691 = vadd.f32 %v690, 1.0
    %v692 = vrcp.pop %v691
    %v693 = vmul.f32 %v691, %v692
    %v694 = vsub.f32 1.0, %v693
    %v695 = vmul.f32 %v692, %v694
    %v696 = vadd.f32 %v692, %v695
    %vm697 = vweird.f32 %v691
    %vm698 = vweird.f32 %v692
    %vm699 = vmor %vm697, %vm698
    %v700 = vsel %vm699, %v692, %v696
    %v701 = vand.u32 2147483647, %v691
    %vm702 = vcmp.eq.f32.partialorder %v701, 8.507059e+37
    %v703 = vand.u32 %v691, 2147483648
    %v704 = vor.u32 1.1754944e-38, %v703
    %v705 = vsel %vm702, %v704, %v700
    %v706 = vmul.f32 1.0, %v705
    %v707 = vtanh.pop %v687
    %v708 = vmul.f32 %v706, 0.0
    %710 = vrot.lane.b32.xlu0 %v707, 32
    %v711 = vpop.permute.xlu0 %710
    %v713 = vmul.f32 %v706, %v711
    %715 = vrot.lane.b32.xlu0 %v713, 32
    %v716 = vpop.permute.xlu0 %715
    %v718 = vadd.f32 %v708, %v716
    %v719 = vtanh.pop %v718
    %721 = vrot.lane.b32.xlu0 %v719, 32
    %v722 = vpop.permute.xlu0 %721
    %v724 = vmul.f32 %v706, %v722
    %v725 = vpack.c.bf16 %v724, %v724
    %727 = vrot.lane.b32.xlu0 %v725, 64
    %v728 = vpop.permute.xlu0 %727
    %v730 = vsel %vm103, %v728, 0
    %732 = vmatpush.bf16.msra.mxu0 0
    %733 = vmatpush.bf16.msra.mxu0 0
    %734 = vmatpush.bf16.msra.mxu0 0
    %735 = vmatpush.bf16.msra.mxu0 0
    %736 = vmatpush.bf16.msra.mxu0 0
    %737 = vmatpush.bf16.msra.mxu0 0
    %738 = vmatpush.bf16.msra.mxu0 %v671
    %739 = vmatpush.bf16.msra.mxu0 %v670
    %740 = vmatmul.bf16.gmra.mxu0 %v730
    %v741 = vpop.f32.mrf.mxu0
    %v742 = vadd.f32 0.0, %v741
    %v743 = vpop.f32.mrf.mxu0
    %744 = vdwg.mxu0
    %v746 = vrot.slane %v742, 6
    %v748 = vadd.f32 %v658, %v746
    %v749 = vxor.u32 %v748, 2147483648
    %v750 = vmul.f32 %v749, 1.442695
    %v751 = vpow.pop %v750
    %v752 = vadd.f32 %v751, 1.0
    %v753 = vrcp.pop %v752
    %v754 = vmul.f32 %v752, %v753
    %v755 = vsub.f32 1.0, %v754
    %v756 = vmul.f32 %v753, %v755
    %v757 = vadd.f32 %v753, %v756
    %vm758 = vweird.f32 %v752
    %vm759 = vweird.f32 %v753
    %vm760 = vmor %vm758, %vm759
    %v761 = vsel %vm760, %v753, %v757
    %v762 = vand.u32 2147483647, %v752
    %vm763 = vcmp.eq.f32.partialorder %v762, 8.507059e+37
    %v764 = vand.u32 %v752, 2147483648
    %v765 = vor.u32 1.1754944e-38, %v764
    %v766 = vsel %vm763, %v765, %v761
    %v767 = vmul.f32 1.0, %v766
    %v768 = vtanh.pop %v748
    %v770 = vrot.slane %v718, 6
    %v772 = vmul.f32 %v767, %v770
    %774 = vrot.lane.b32.xlu0 %v768, 32
    %v775 = vpop.permute.xlu0 %774
    %v777 = vmul.f32 %v767, %v775
    %779 = vrot.lane.b32.xlu0 %v777, 32
    %v780 = vpop.permute.xlu0 %779
    %v782 = vadd.f32 %v772, %v780
    %v783 = vtanh.pop %v782
    %785 = vrot.lane.b32.xlu0 %v783, 32
    %v786 = vpop.permute.xlu0 %785
    %v788 = vmul.f32 %v767, %v786
    %v789 = vpack.c.bf16 %v788, %v788
    %v791 = vrot.slane %v789, 1
    %792 = vrot.lane.b32.xlu0 %v791, 64
    %v793 = vpop.permute.xlu0 %792
    %v795 = vsel %vm103, %v793, 0
    %797 = vmatpush.bf16.msra.mxu0 0
    %798 = vmatpush.bf16.msra.mxu0 0
    %799 = vmatpush.bf16.msra.mxu0 0
    %800 = vmatpush.bf16.msra.mxu0 0
    %801 = vmatpush.bf16.msra.mxu0 0
    %802 = vmatpush.bf16.msra.mxu0 0
    %803 = vmatpush.bf16.msra.mxu0 %v671
    %804 = vmatpush.bf16.msra.mxu0 %v670
    %805 = vmatmul.bf16.gmra.mxu0 %v795
    %v806 = vpop.f32.mrf.mxu0
    %v807 = vadd.f32 0.0, %v806
    %v808 = vpop.f32.mrf.mxu0
    %809 = vdwg.mxu0
    %v811 = vrot.slane %v807, 4
    %v813 = vadd.f32 %v658, %v811
    %v814 = vxor.u32 %v813, 2147483648
    %v815 = vmul.f32 %v814, 1.442695
    %v816 = vpow.pop %v815
    %v817 = vadd.f32 %v816, 1.0
    %v818 = vrcp.pop %v817
    %v819 = vmul.f32 %v817, %v818
    %v820 = vsub.f32 1.0, %v819
    %v821 = vmul.f32 %v818, %v820
    %v822 = vadd.f32 %v818, %v821
    %vm823 = vweird.f32 %v817
    %vm824 = vweird.f32 %v818
    %vm825 = vmor %vm823, %vm824
    %v826 = vsel %vm825, %v818, %v822
    %v827 = vand.u32 2147483647, %v817
    %vm828 = vcmp.eq.f32.partialorder %v827, 8.507059e+37
    %v829 = vand.u32 %v817, 2147483648
    %v830 = vor.u32 1.1754944e-38, %v829
    %v831 = vsel %vm828, %v830, %v826
    %v832 = vmul.f32 1.0, %v831
    %v833 = vtanh.pop %v813
    %v835 = vrot.slane %v782, 6
    %v837 = vmul.f32 %v832, %v835
    %839 = vrot.lane.b32.xlu0 %v833, 32
    %v840 = vpop.permute.xlu0 %839
    %v842 = vmul.f32 %v832, %v840
    %844 = vrot.lane.b32.xlu0 %v842, 32
    %v845 = vpop.permute.xlu0 %844
    %v847 = vadd.f32 %v837, %v845
    %v848 = vtanh.pop %v847
    %850 = vrot.lane.b32.xlu0 %v848, 32
    %v851 = vpop.permute.xlu0 %850
    %v853 = vmul.f32 %v832, %v851
    %v854 = vpack.c.bf16 %v853, %v853
    %v856 = vrot.slane %v854, 2
    %857 = vrot.lane.b32.xlu0 %v856, 64
    %v858 = vpop.permute.xlu0 %857
    %v860 = vsel %vm103, %v858, 0
    %862 = vmatpush.bf16.msra.mxu0 0
    %863 = vmatpush.bf16.msra.mxu0 0
    %864 = vmatpush.bf16.msra.mxu0 0
    %865 = vmatpush.bf16.msra.mxu0 0
    %866 = vmatpush.bf16.msra.mxu0 0
    %867 = vmatpush.bf16.msra.mxu0 0
    %868 = vmatpush.bf16.msra.mxu0 %v671
    %869 = vmatpush.bf16.msra.mxu0 %v670
    %870 = vmatmul.bf16.gmra.mxu0 %v860
    %v871 = vpop.f32.mrf.mxu0
    %v872 = vadd.f32 0.0, %v871
    %v873 = vpop.f32.mrf.mxu0
    %874 = vdwg.mxu0
    %v876 = vrot.slane %v872, 2
    %v878 = vadd.f32 %v658, %v876
    %v879 = vxor.u32 %v878, 2147483648
    %v880 = vmul.f32 %v879, 1.442695
    %v881 = vpow.pop %v880
    %v882 = vadd.f32 %v881, 1.0
    %v883 = vrcp.pop %v882
    %v884 = vmul.f32 %v882, %v883
    %v885 = vsub.f32 1.0, %v884
    %v886 = vmul.f32 %v883, %v885
    %v887 = vadd.f32 %v883, %v886
    %vm888 = vweird.f32 %v882
    %vm889 = vweird.f32 %v883
    %vm890 = vmor %vm888, %vm889
    %v891 = vsel %vm890, %v883, %v887
    %v892 = vand.u32 2147483647, %v882
    %vm893 = vcmp.eq.f32.partialorder %v892, 8.507059e+37
    %v894 = vand.u32 %v882, 2147483648
    %v895 = vor.u32 1.1754944e-38, %v894
    %v896 = vsel %vm893, %v895, %v891
    %v897 = vmul.f32 1.0, %v896
    %v898 = vtanh.pop %v878
    %v900 = vrot.slane %v847, 6
    %v902 = vmul.f32 %v897, %v900
    %904 = vrot.lane.b32.xlu0 %v898, 32
    %v905 = vpop.permute.xlu0 %904
    %v907 = vmul.f32 %v897, %v905
    %909 = vrot.lane.b32.xlu0 %v907, 32
    %v910 = vpop.permute.xlu0 %909
    %v912 = vadd.f32 %v902, %v910
    %v913 = vtanh.pop %v912
    %915 = vrot.lane.b32.xlu0 %v913, 32
    %v916 = vpop.permute.xlu0 %915
    %v918 = vmul.f32 %v897, %v916
    %v919 = vpack.c.bf16 %v918, %v918
    %v921 = vrot.slane %v919, 3
    %922 = vrot.lane.b32.xlu0 %v921, 64
    %v923 = vpop.permute.xlu0 %922
    %v925 = vsel %vm103, %v923, 0
    %927 = vmatpush.bf16.msra.mxu0 0
    %928 = vmatpush.bf16.msra.mxu0 0
    %929 = vmatpush.bf16.msra.mxu0 0
    %930 = vmatpush.bf16.msra.mxu0 0
    %931 = vmatpush.bf16.msra.mxu0 0
    %932 = vmatpush.bf16.msra.mxu0 0
    %933 = vmatpush.bf16.msra.mxu0 %v671
    %934 = vmatpush.bf16.msra.mxu0 %v670
    %935 = vmatmul.bf16.gmra.mxu0 %v925
    %v936 = vpop.f32.mrf.mxu0
    %v937 = vadd.f32 0.0, %v936
    %v938 = vpop.f32.mrf.mxu0
    %939 = vdwg.mxu0
    %v940 = vadd.f32 %v660, %v937
    %v941 = vxor.u32 %v940, 2147483648
    %v942 = vmul.f32 %v941, 1.442695
    %v943 = vpow.pop %v942
    %v944 = vadd.f32 %v943, 1.0
    %v945 = vrcp.pop %v944
    %v946 = vmul.f32 %v944, %v945
    %v947 = vsub.f32 1.0, %v946
    %v948 = vmul.f32 %v945, %v947
    %v949 = vadd.f32 %v945, %v948
    %vm950 = vweird.f32 %v944
    %vm951 = vweird.f32 %v945
    %vm952 = vmor %vm950, %vm951
    %v953 = vsel %vm952, %v945, %v949
    %v954 = vand.u32 2147483647, %v944
    %vm955 = vcmp.eq.f32.partialorder %v954, 8.507059e+37
    %v956 = vand.u32 %v944, 2147483648
    %v957 = vor.u32 1.1754944e-38, %v956
    %v958 = vsel %vm955, %v957, %v953
    %v959 = vmul.f32 1.0, %v958
    %v960 = vtanh.pop %v940
    %v962 = vrot.slane %v912, 6
    %v964 = vmul.f32 %v959, %v962
    %966 = vrot.lane.b32.xlu0 %v960, 32
    %v967 = vpop.permute.xlu0 %966
    %v969 = vmul.f32 %v959, %v967
    %971 = vrot.lane.b32.xlu0 %v969, 32
    %v972 = vpop.permute.xlu0 %971
    %v974 = vadd.f32 %v964, %v972
    %v975 = vtanh.pop %v974
    %977 = vrot.lane.b32.xlu0 %v975, 32
    %v978 = vpop.permute.xlu0 %977
    %v980 = vmul.f32 %v959, %v978
    %v981 = vpack.c.bf16 %v980, %v980
    %983 = vrot.lane.b32.xlu0 %v981, 64
    %v984 = vpop.permute.xlu0 %983
    %v986 = vsel %vm103, %v984, 0
    %988 = vmatpush.bf16.msra.mxu0 0
    %989 = vmatpush.bf16.msra.mxu0 0
    %990 = vmatpush.bf16.msra.mxu0 0
    %991 = vmatpush.bf16.msra.mxu0 0
    %992 = vmatpush.bf16.msra.mxu0 0
    %993 = vmatpush.bf16.msra.mxu0 0
    %994 = vmatpush.bf16.msra.mxu0 %v671
    %995 = vmatpush.bf16.msra.mxu0 %v670
    %996 = vmatmul.bf16.gmra.mxu0 %v986
    %v997 = vpop.f32.mrf.mxu0
    %v998 = vadd.f32 0.0, %v997
    %v999 = vpop.f32.mrf.mxu0
    %1000 = vdwg.mxu0
    %v1002 = vrot.slane %v998, 6
    %v1004 = vadd.f32 %v660, %v1002
    %v1005 = vxor.u32 %v1004, 2147483648
    %v1006 = vmul.f32 %v1005, 1.442695
    %v1007 = vpow.pop %v1006
    %v1008 = vadd.f32 %v1007, 1.0
    %v1009 = vrcp.pop %v1008
    %v1010 = vmul.f32 %v1008, %v1009
    %v1011 = vsub.f32 1.0, %v1010
    %v1012 = vmul.f32 %v1009, %v1011
    %v1013 = vadd.f32 %v1009, %v1012
    %vm1014 = vweird.f32 %v1008
    %vm1015 = vweird.f32 %v1009
    %vm1016 = vmor %vm1014, %vm1015
    %v1017 = vsel %vm1016, %v1009, %v1013
    %v1018 = vand.u32 2147483647, %v1008
    %vm1019 = vcmp.eq.f32.partialorder %v1018, 8.507059e+37
    %v1020 = vand.u32 %v1008, 2147483648
    %v1021 = vor.u32 1.1754944e-38, %v1020
    %v1022 = vsel %vm1019, %v1021, %v1017
    %v1023 = vmul.f32 1.0, %v1022
    %v1024 = vtanh.pop %v1004
    %v1026 = vrot.slane %v974, 6
    %v1028 = vmul.f32 %v1023, %v1026
    %1030 = vrot.lane.b32.xlu0 %v1024, 32
    %v1031 = vpop.permute.xlu0 %1030
    %v1033 = vmul.f32 %v1023, %v1031
    %1035 = vrot.lane.b32.xlu0 %v1033, 32
    %v1036 = vpop.permute.xlu0 %1035
    %v1038 = vadd.f32 %v1028, %v1036
    %v1039 = vtanh.pop %v1038
    %1041 = vrot.lane.b32.xlu0 %v1039, 32
    %v1042 = vpop.permute.xlu0 %1041
    %v1044 = vmul.f32 %v1023, %v1042
    %v1045 = vpack.c.bf16 %v1044, %v1044
    %v1047 = vrot.slane %v1045, 1
    %1048 = vrot.lane.b32.xlu0 %v1047, 64
    %v1049 = vpop.permute.xlu0 %1048
    %v1051 = vsel %vm103, %v1049, 0
    %1053 = vmatpush.bf16.msra.mxu0 0
    %1054 = vmatpush.bf16.msra.mxu0 0
    %1055 = vmatpush.bf16.msra.mxu0 0
    %1056 = vmatpush.bf16.msra.mxu0 0
    %1057 = vmatpush.bf16.msra.mxu0 0
    %1058 = vmatpush.bf16.msra.mxu0 0
    %1059 = vmatpush.bf16.msra.mxu0 %v671
    %1060 = vmatpush.bf16.msra.mxu0 %v670
    %1061 = vmatmul.bf16.gmra.mxu0 %v1051
    %v1062 = vpop.f32.mrf.mxu0
    %v1063 = vadd.f32 0.0, %v1062
    %v1064 = vpop.f32.mrf.mxu0
    %1065 = vdwg.mxu0
    %v1067 = vrot.slane %v1063, 4
    %v1069 = vadd.f32 %v660, %v1067
    %v1070 = vxor.u32 %v1069, 2147483648
    %v1071 = vmul.f32 %v1070, 1.442695
    %v1072 = vpow.pop %v1071
    %v1073 = vadd.f32 %v1072, 1.0
    %v1074 = vrcp.pop %v1073
    %v1075 = vmul.f32 %v1073, %v1074
    %v1076 = vsub.f32 1.0, %v1075
    %v1077 = vmul.f32 %v1074, %v1076
    %v1078 = vadd.f32 %v1074, %v1077
    %vm1079 = vweird.f32 %v1073
    %vm1080 = vweird.f32 %v1074
    %vm1081 = vmor %vm1079, %vm1080
    %v1082 = vsel %vm1081, %v1074, %v1078
    %v1083 = vand.u32 2147483647, %v1073
    %vm1084 = vcmp.eq.f32.partialorder %v1083, 8.507059e+37
    %v1085 = vand.u32 %v1073, 2147483648
    %v1086 = vor.u32 1.1754944e-38, %v1085
    %v1087 = vsel %vm1084, %v1086, %v1082
    %v1088 = vmul.f32 1.0, %v1087
    %v1089 = vtanh.pop %v1069
    %v1091 = vrot.slane %v1038, 6
    %v1093 = vmul.f32 %v1088, %v1091
    %1095 = vrot.lane.b32.xlu0 %v1089, 32
    %v1096 = vpop.permute.xlu0 %1095
    %v1098 = vmul.f32 %v1088, %v1096
    %1100 = vrot.lane.b32.xlu0 %v1098, 32
    %v1101 = vpop.permute.xlu0 %1100
    %v1103 = vadd.f32 %v1093, %v1101
    %v1104 = vtanh.pop %v1103
    %1106 = vrot.lane.b32.xlu0 %v1104, 32
    %v1107 = vpop.permute.xlu0 %1106
    %v1109 = vmul.f32 %v1088, %v1107
    %v1110 = vpack.c.bf16 %v1109, %v1109
    %v1112 = vrot.slane %v1110, 2
    %1113 = vrot.lane.b32.xlu0 %v1112, 64
    %v1114 = vpop.permute.xlu0 %1113
    %v1116 = vsel %vm103, %v1114, 0
    %1118 = vmatpush.bf16.msra.mxu0 0
    %1119 = vmatpush.bf16.msra.mxu0 0
    %1120 = vmatpush.bf16.msra.mxu0 0
    %1121 = vmatpush.bf16.msra.mxu0 0
    %1122 = vmatpush.bf16.msra.mxu0 0
    %1123 = vmatpush.bf16.msra.mxu0 0
    %1124 = vmatpush.bf16.msra.mxu0 %v671
    %1125 = vmatpush.bf16.msra.mxu0 %v670
    %1126 = vmatmul.bf16.gmra.mxu0 %v1116
    %v1127 = vpop.f32.mrf.mxu0
    %v1128 = vadd.f32 0.0, %v1127
    %v1129 = vpop.f32.mrf.mxu0
    %1130 = vdwg.mxu0
    %v1132 = vrot.slane %v1128, 2
    %v1134 = vadd.f32 %v660, %v1132
    %v1135 = vxor.u32 %v1134, 2147483648
    %v1136 = vmul.f32 %v1135, 1.442695
    %v1137 = vpow.pop %v1136
    %v1138 = vadd.f32 %v1137, 1.0
    %v1139 = vrcp.pop %v1138
    %v1140 = vmul.f32 %v1138, %v1139
    %v1141 = vsub.f32 1.0, %v1140
    %v1142 = vmul.f32 %v1139, %v1141
    %v1143 = vadd.f32 %v1139, %v1142
    %vm1144 = vweird.f32 %v1138
    %vm1145 = vweird.f32 %v1139
    %vm1146 = vmor %vm1144, %vm1145
    %v1147 = vsel %vm1146, %v1139, %v1143
    %v1148 = vand.u32 2147483647, %v1138
    %vm1149 = vcmp.eq.f32.partialorder %v1148, 8.507059e+37
    %v1150 = vand.u32 %v1138, 2147483648
    %v1151 = vor.u32 1.1754944e-38, %v1150
    %v1152 = vsel %vm1149, %v1151, %v1147
    %v1153 = vmul.f32 1.0, %v1152
    %v1154 = vtanh.pop %v1134
    %v1156 = vrot.slane %v1103, 6
    %v1158 = vmul.f32 %v1153, %v1156
    %1160 = vrot.lane.b32.xlu0 %v1154, 32
    %v1161 = vpop.permute.xlu0 %1160
    %v1163 = vmul.f32 %v1153, %v1161
    %1165 = vrot.lane.b32.xlu0 %v1163, 32
    %v1166 = vpop.permute.xlu0 %1165
    %v1168 = vadd.f32 %v1158, %v1166
    %v1169 = vtanh.pop %v1168
    %1171 = vrot.lane.b32.xlu0 %v1169, 32
    %v1172 = vpop.permute.xlu0 %1171
    %v1174 = vmul.f32 %v1153, %v1172
    %1176 = vrot.lane.b32.xlu0 %v724, 64
    %v1177 = vpop.permute.xlu0 %1176
    %v1180 = vrot.slane %v788, 2
    %1181 = vrot.lane.b32.xlu0 %v1180, 96
    %v1182 = vpop.permute.xlu0 %1181
    %v1185 = vrot.slane %v853, 4
    %v1188 = vrot.slane %v918, 6
    %1189 = vrot.lane.b32.xlu0 %v1188, 32
    %v1190 = vpop.permute.xlu0 %1189
    %1193 = vrot.lane.b32.xlu0 %v980, 64
    %v1194 = vpop.permute.xlu0 %1193
    %v1197 = vrot.slane %v1044, 2
    %1198 = vrot.lane.b32.xlu0 %v1197, 96
    %v1199 = vpop.permute.xlu0 %1198
    %v1202 = vrot.slane %v1109, 4
    %v1205 = vrot.slane %v1174, 6
    %1206 = vrot.lane.b32.xlu0 %v1205, 32
    %v1207 = vpop.permute.xlu0 %1206
    %v1209 = vsel %vm103, %v1177, %v1182
    %vm1210 = vcmask 523264
    %v1211 = vsel %vm1210, %v1209, %v1185
    %vm1212 = vcmask 785408
    %v1213 = vsel %vm1212, %v1211, %v1190
    %v1214 = vsel %vm103, %v1194, %v1199
    %v1215 = vsel %vm1210, %v1214, %v1202
    %v1216 = vsel %vm1212, %v1215, %v1207
    %v1219 = vrot.slane %v1216, 6
    %v1220 = vsel %vm617, %v1213, %v1219
    %1222 = vst [vmem:[#allocation10] sm:$0xf] %v1220
    // Predicated region
    $region38: #{tpu_custom_call.1} parent=1 // pred_check
      _
    $region39: #{tpu_custom_call.1} parent=1 // pred_check_branch
      %1224 = sbr.rel (0) target = $region41
    $region40: #{tpu_custom_call.1} parent=1 // pred_region
      %1226 = vsyncadd [#allocation4], 0
      %s1228 = sshll.u32 [#allocation10], 4
      %s1229 = int_to_ptr.vmem [resolvable:$true] %s1228
      %s1230 = sshll.u32 %s5, 4
      %s1231 = int_to_ptr.hbm [resolvable:$true] %s1230
      %1233 = dma.vmem_to_hbm [thread:$0]  %s1229, 64, %s1231, [#allocation4]
    $region41: #{tpu_custom_call.1} parent=1 // pred_fallthru
      _
    // Predicated region
    $region42: #{tpu_custom_call.1} parent=1 // pred_check
      _
    $region43: #{tpu_custom_call.1} parent=1 // pred_check_branch
      %1235 = sbr.rel (0) target = $region45
    $region44: #{tpu_custom_call.1} parent=1 // pred_region
      %1237 = dma.done [#allocation4], 64
    $region45: #{tpu_custom_call.1} parent=1 // pred_fallthru
      _
    %1238 = vsyncpa [#allocation3], 1
    %1239 = vsyncpa [#allocation6], 1
    %1240 = vsyncpa [#allocation9], 1
    %1241 = vsyncpa [#allocation4], 1

</llo_original>
